<compile_context>
chip_gen: v6e
topology: v6e:2x2x1
jax: 0.10.0
libtpu: 0.0.40
codegen_flags: <defaults>
</compile_context>

<pallas_src>
import functools

import jax
import jax.numpy as jnp
from jax import lax
from jax.experimental import pallas as pl
from jax.experimental.pallas import tpu as pltpu


def _round_up(x, m):
    return (x + m - 1) // m * m


# ----------------------------------------------------------------------------
# Pallas kernel: the whole decoder MLP for one batch tile.
# ----------------------------------------------------------------------------
def _decoder_kernel(
    z_ref,                 # [TB, latent_dim]
    w0_ref, b0_ref,        # decoder_input  (Linear, no BN)           -> ReLU
    w1_ref, c1_ref,        # fc_block 1 (Linear with BN+bias folded)  -> ReLU
    w2_ref, c2_ref,        # fc_block 2 (Linear with BN+bias folded)  -> ReLU
    wh_ref, bh_ref,        # fused+padded heads [D, Npad], [1, Npad]
    out_ref,               # [TB, Npad]  ( [:, :C] = mu, [:, C:2C] = scale )
    *,
    n_mu,
):
    wdt = w0_ref.dtype      # bf16 (default, MXU-native) or f32 (tight check)
    x = z_ref[...]

    # decoder_input: Linear -> ReLU   (BN=False)
    h = jnp.dot(x.astype(wdt), w0_ref[...],
                preferred_element_type=jnp.float32) + b0_ref[...]
    h = jnp.maximum(h, 0.0)

    # fc_block 1: Linear (BN + bias pre-folded into weights) -> ReLU
    h = jnp.dot(h.astype(wdt), w1_ref[...],
                preferred_element_type=jnp.float32) + c1_ref[...]
    h = jnp.maximum(h, 0.0)

    # fc_block 2: Linear (BN + bias pre-folded into weights) -> ReLU
    h = jnp.dot(h.astype(wdt), w2_ref[...],
                preferred_element_type=jnp.float32) + c2_ref[...]
    h = jnp.maximum(h, 0.0)

    # Fused heads: one matmul producing [mu || 0.5*log_var || zero-pad] with a
    # lane-dense (multiple-of-128) output width -> unmasked full-vreg stores.
    head = jnp.dot(h.astype(wdt), wh_ref[...],
                   preferred_element_type=jnp.float32) + bh_ref[...]

    # mu on lanes [0, n_mu), scale = exp(head) on lanes [n_mu, ...).
    # The exponent is masked to 0 on the mu lanes so the discarded branch can
    # never produce inf; exp goes to the EUP (separate issue slot).
    lane = lax.broadcasted_iota(jnp.int32, head.shape, dimension=1)
    is_mu = lane < n_mu
    safe_exponent = jnp.where(is_mu, 0.0, head)
    out = jnp.where(is_mu, head, jnp.exp(safe_exponent))
    out_ref[...] = out.astype(out_ref.dtype)


# ----------------------------------------------------------------------------
# One-time parameter preparation (BN + bias fold, head concat+pad, bf16 cast).
# ----------------------------------------------------------------------------
def prepare_decoder_params(params, weight_dtype=jnp.bfloat16):
    """Fold BN(eval)+bias into weights, fuse+pad the heads, cast weights."""
    eps = 1e-5

    def row(v):  # 1-D vector -> [1, D] so it broadcasts over the batch tile
        return v.reshape(1, -1).astype(jnp.float32)

    def fold(w, b, idx):
        # y = ((x@w + b) - mean) * gamma / sqrt(var+eps) + beta
        #   = x @ (w * a) + (b * a + shift)
        inv = params[f"bn{idx}_gamma"] / jnp.sqrt(params[f"bn{idx}_var"] + eps)
        shift = params[f"bn{idx}_beta"] - params[f"bn{idx}_mean"] * inv
        return w * inv[None, :], b * inv + shift

    w1, c1 = fold(params["w1"], params["b1"], 1)
    w2, c2 = fold(params["w2"], params["b2"], 2)

    # Fused head: [mu || 0.5*log_var].  The 0.5 of exp(0.5*log_var) is folded
    # into the weights/bias here so the kernel only needs exp().
    wh = jnp.concatenate([params["wmu"], 0.5 * params["wvar"]], axis=1)
    bh = jnp.concatenate([params["bmu"], 0.5 * params["bvar"]], axis=0)

    # Lane-dense output: zero-pad the head to a multiple of 128 lanes so every
    # output store is a full unmasked vst (2*C = 32 would force vst.msk).
    n_mu = int(params["wmu"].shape[1])
    n_out = 2 * n_mu
    n_out_pad = max(128, _round_up(n_out, 128))
    if n_out_pad != n_out:
        wh = jnp.pad(wh, ((0, 0), (0, n_out_pad - n_out)))
        bh = jnp.pad(bh, (0, n_out_pad - n_out))

    return {
        "w0": params["w0"].astype(weight_dtype), "b0": row(params["b0"]),
        "w1": w1.astype(weight_dtype),           "c1": row(c1),
        "w2": w2.astype(weight_dtype),           "c2": row(c2),
        "wh": wh.astype(weight_dtype),           "bh": row(bh),
        "n_mu": n_mu,
        "n_out_pad": n_out_pad,
    }


# ----------------------------------------------------------------------------
# Wrapper: builds grid / BlockSpecs and calls the kernel.
# ----------------------------------------------------------------------------
def decoder_forward(z, prep, *, tile_b=128):
    """Returns (mu, scale) of the Independent(Normal) output distribution."""
    B, latent_dim = z.shape
    n_mu = prep["n_mu"]
    n_out_pad = prep["n_out_pad"]

    # Batch tile: keep <=128 (the [tb, 512] f32 intermediate is already the
    # full vreg file at tb=128; bigger only spills).  Guarantee >=2 grid steps
    # whenever there are enough rows so the "parallel" batch axis can be
    # sharded across both v7x TensorCores and the resident weights are
    # amortized over multiple steps.
    tb = min(tile_b, _round_up(B, 8))
    if B > 8 and _round_up(B, tb) // tb < 2:
        tb = _round_up(_round_up(B, 8) // 2, 8)
    Bp = _round_up(B, tb)
    if Bp != B:
        z = jnp.pad(z, ((0, Bp - B), (0, 0)))

    inputs = (
        z,
        prep["w0"], prep["b0"],
        prep["w1"], prep["c1"],
        prep["w2"], prep["c2"],
        prep["wh"], prep["bh"],
    )

    # Weights/biases: whole array with a constant block index -> DMAed once,
    # stays resident in VMEM across all grid steps (no per-step re-DMA).
    def resident(arr):
        return pl.BlockSpec(arr.shape, lambda i: (0, 0))

    in_specs = [pl.BlockSpec((tb, latent_dim), lambda i: (i, 0))]
    in_specs += [resident(a) for a in inputs[1:]]
    out_spec = pl.BlockSpec((tb, n_out_pad), lambda i: (i, 0))

    out = pl.pallas_call(
        functools.partial(_decoder_kernel, n_mu=n_mu),
        out_shape=jax.ShapeDtypeStruct((Bp, n_out_pad), jnp.float32),
        grid_spec=pltpu.PrefetchScalarGridSpec(
            num_scalar_prefetch=0,
            grid=(Bp // tb,),
            in_specs=in_specs,
            out_specs=out_spec,
        ),
        compiler_params=pltpu.CompilerParams(
            dimension_semantics=(pltpu.PARALLEL,),  # batch tiles across TCs
        ),
    )(*inputs)

    mu = out[:B, :n_mu]
    scale = out[:B, n_mu:2 * n_mu]
    return mu, scale


# ----------------------------------------------------------------------------
# Deterministic parameter init (mimics PyTorch nn.Linear default init).
# ----------------------------------------------------------------------------
def init_params(key, latent_dim, in_channels, n_channels):
    dims = [latent_dim] + list(n_channels)
    params = {}
    keys = jax.random.split(key, 16)
    k = iter(keys)

    def linear(key_w, key_b, din, dout):
        bound = 1.0 / jnp.sqrt(din)
        w = jax.random.uniform(key_w, (din, dout), jnp.float32, -bound, bound)
        b = jax.random.uniform(key_b, (dout,), jnp.float32, -bound, bound)
        return w, b

    params["w0"], params["b0"] = linear(next(k), next(k), dims[0], dims[1])
    params["w1"], params["b1"] = linear(next(k), next(k), dims[1], dims[2])
    params["w2"], params["b2"] = linear(next(k), next(k), dims[2], dims[3])
    params["wmu"], params["bmu"] = linear(next(k), next(k), dims[3], in_channels)
    params["wvar"], params["bvar"] = linear(next(k), next(k), dims[3], in_channels)

    # BatchNorm1d params with non-trivial running stats so the fold is exercised.
    for idx, d in ((1, dims[2]), (2, dims[3])):
        params[f"bn{idx}_gamma"] = jnp.ones((d,), jnp.float32)
        params[f"bn{idx}_beta"] = jnp.zeros((d,), jnp.float32)
        params[f"bn{idx}_mean"] = 0.01 * jax.random.normal(next(k), (d,), jnp.float32)
        params[f"bn{idx}_var"] = jnp.ones((d,), jnp.float32) + 0.1 * jax.random.uniform(
            next(k), (d,), jnp.float32
        )
    return params


# ----------------------------------------------------------------------------
# Pure-JAX reference for a sanity check.
# ----------------------------------------------------------------------------
def decoder_ref(z, p):
    eps = 1e-5
    h = jnp.maximum(z @ p["w0"] + p["b0"], 0.0)
    h = h @ p["w1"] + p["b1"]
    h = (h - p["bn1_mean"]) / jnp.sqrt(p["bn1_var"] + eps) * p["bn1_gamma"] + p["bn1_beta"]
    h = jnp.maximum(h, 0.0)
    h = h @ p["w2"] + p["b2"]
    h = (h - p["bn2_mean"]) / jnp.sqrt(p["bn2_var"] + eps) * p["bn2_gamma"] + p["bn2_beta"]
    h = jnp.maximum(h, 0.0)
    mu = h @ p["wmu"] + p["bmu"]
    log_var = h @ p["wvar"] + p["bvar"]
    return mu, jnp.exp(0.5 * log_var)


if __name__ == "__main__":
    # Shapes consistent with the module: Decoder(in_channels=16, latent_dim=32,
    # activation=ReLU, n_channels=[128, 256, 512]).  batch=256 with tile_b=128
    # gives 2 grid steps, so both v7x TensorCores get work.
    batch = 256
    latent_dim = 32
    in_channels = 16
    n_channels = [128, 256, 512]

    key = jax.random.PRNGKey(0)
    k_param, k_z = jax.random.split(key)
    params = init_params(k_param, latent_dim, in_channels, n_channels)
    z = jax.random.normal(k_z, (batch, latent_dim), jnp.float32)

    mu_ref, scale_ref = decoder_ref(z, params)

    # 1) Tight correctness check with f32 weights.
    prep_f32 = prepare_decoder_params(params, weight_dtype=jnp.float32)
    mu32, scale32 = decoder_forward(z, prep_f32, tile_b=128)
    jax.block_until_ready((mu32, scale32))
    assert jnp.allclose(mu32, mu_ref, atol=1e-4, rtol=1e-4), "mu mismatch (f32)"
    assert jnp.allclose(scale32, scale_ref, atol=1e-4, rtol=1e-4), "scale mismatch (f32)"

    # 2) Production path: bf16 weights (halved weight HBM traffic, MXU-native on
    #    all generations), f32 accumulation/elementwise -> looser tolerance.
    prep_bf16 = prepare_decoder_params(params, weight_dtype=jnp.bfloat16)
    mu, scale = decoder_forward(z, prep_bf16, tile_b=128)
    jax.block_until_ready((mu, scale))
    assert jnp.allclose(mu, mu_ref, atol=5e-2, rtol=5e-2), "mu mismatch (bf16)"
    assert jnp.allclose(scale, scale_ref, atol=5e-2, rtol=5e-2), "scale mismatch (bf16)"

    print("KERNEL_OK")
</pallas_src>

<mosaic_0001>
module attributes {stable_mosaic.version = 11 : i64} {
  func.func @_decoder_kernel(%arg0: i32, %arg1: memref<128x32xf32, #tpu.memory_space<vmem>>, %arg2: memref<32x128xf32, #tpu.memory_space<vmem>>, %arg3: memref<1x128xf32, #tpu.memory_space<vmem>>, %arg4: memref<128x256xf32, #tpu.memory_space<vmem>>, %arg5: memref<1x256xf32, #tpu.memory_space<vmem>>, %arg6: memref<256x512xf32, #tpu.memory_space<vmem>>, %arg7: memref<1x512xf32, #tpu.memory_space<vmem>>, %arg8: memref<512x128xf32, #tpu.memory_space<vmem>>, %arg9: memref<1x128xf32, #tpu.memory_space<vmem>>, %arg10: memref<128x128xf32, #tpu.memory_space<vmem>>) attributes {dimension_semantics = [#tpu.dimension_semantics<parallel>], iteration_bounds = array<i64: 2>, scalar_prefetch = 0 : i64, scratch_operands = 0 : i64, tpu.core_type = #tpu.core_type<tc>, window_params = [{transform_indices = @transform_0, window_bounds = array<i64: 128, 32>}, {pipeline_mode = #tpu.pipeline_mode<synchronous>, transform_indices = @transform_1, window_bounds = array<i64: 32, 128>}, {pipeline_mode = #tpu.pipeline_mode<synchronous>, transform_indices = @transform_2, window_bounds = array<i64: 1, 128>}, {pipeline_mode = #tpu.pipeline_mode<synchronous>, transform_indices = @transform_3, window_bounds = array<i64: 128, 256>}, {pipeline_mode = #tpu.pipeline_mode<synchronous>, transform_indices = @transform_4, window_bounds = array<i64: 1, 256>}, {pipeline_mode = #tpu.pipeline_mode<synchronous>, transform_indices = @transform_5, window_bounds = array<i64: 256, 512>}, {pipeline_mode = #tpu.pipeline_mode<synchronous>, transform_indices = @transform_6, window_bounds = array<i64: 1, 512>}, {pipeline_mode = #tpu.pipeline_mode<synchronous>, transform_indices = @transform_7, window_bounds = array<i64: 512, 128>}, {pipeline_mode = #tpu.pipeline_mode<synchronous>, transform_indices = @transform_8, window_bounds = array<i64: 1, 128>}, {transform_indices = @transform_9, window_bounds = array<i64: 128, 128>}]} {
    %c0 = arith.constant 0 : index
    %c0_0 = arith.constant 0 : index
    %0 = vector.load %arg1[%c0, %c0_0] : memref<128x32xf32, #tpu.memory_space<vmem>>, vector<128x32xf32>
    %c0_1 = arith.constant 0 : index
    %c0_2 = arith.constant 0 : index
    %1 = vector.load %arg2[%c0_1, %c0_2] : memref<32x128xf32, #tpu.memory_space<vmem>>, vector<32x128xf32>
    %cst = arith.constant dense<0.000000e+00> : vector<128x128xf32>
    %2 = tpu.matmul %0, %1, %cst {dimension_numbers = #tpu.dot_dimension_numbers<[1], [0], [0], [1], [0, 0, 1, 1], [], []>} : vector<128x32xf32>, vector<32x128xf32>, vector<128x128xf32> -> vector<128x128xf32>
    %c0_3 = arith.constant 0 : index
    %c0_4 = arith.constant 0 : index
    %3 = vector.load %arg3[%c0_3, %c0_4] : memref<1x128xf32, #tpu.memory_space<vmem>>, vector<1x128xf32>
    %4 = vector.broadcast %3 : vector<1x128xf32> to vector<128x128xf32>
    %5 = arith.addf %2, %4 : vector<128x128xf32>
    %cst_5 = arith.constant 0.000000e+00 : f32
    %6 = vector.broadcast %cst_5 : f32 to vector<128x128xf32>
    %7 = arith.maximumf %5, %6 : vector<128x128xf32>
    %c0_6 = arith.constant 0 : index
    %c0_7 = arith.constant 0 : index
    %8 = vector.load %arg4[%c0_6, %c0_7] : memref<128x256xf32, #tpu.memory_space<vmem>>, vector<128x256xf32>
    %cst_8 = arith.constant dense<0.000000e+00> : vector<128x256xf32>
    %9 = tpu.matmul %7, %8, %cst_8 {dimension_numbers = #tpu.dot_dimension_numbers<[1], [0], [0], [1], [0, 0, 1, 1], [], []>} : vector<128x128xf32>, vector<128x256xf32>, vector<128x256xf32> -> vector<128x256xf32>
    %c0_9 = arith.constant 0 : index
    %c0_10 = arith.constant 0 : index
    %10 = vector.load %arg5[%c0_9, %c0_10] : memref<1x256xf32, #tpu.memory_space<vmem>>, vector<1x256xf32>
    %11 = vector.broadcast %10 : vector<1x256xf32> to vector<128x256xf32>
    %12 = arith.addf %9, %11 : vector<128x256xf32>
    %cst_11 = arith.constant 0.000000e+00 : f32
    %13 = vector.broadcast %cst_11 : f32 to vector<128x256xf32>
    %14 = arith.maximumf %12, %13 : vector<128x256xf32>
    %c0_12 = arith.constant 0 : index
    %c0_13 = arith.constant 0 : index
    %15 = vector.load %arg6[%c0_12, %c0_13] : memref<256x512xf32, #tpu.memory_space<vmem>>, vector<256x512xf32>
    %cst_14 = arith.constant dense<0.000000e+00> : vector<128x512xf32>
    %16 = tpu.matmul %14, %15, %cst_14 {dimension_numbers = #tpu.dot_dimension_numbers<[1], [0], [0], [1], [0, 0, 1, 1], [], []>} : vector<128x256xf32>, vector<256x512xf32>, vector<128x512xf32> -> vector<128x512xf32>
    %c0_15 = arith.constant 0 : index
    %c0_16 = arith.constant 0 : index
    %17 = vector.load %arg7[%c0_15, %c0_16] : memref<1x512xf32, #tpu.memory_space<vmem>>, vector<1x512xf32>
    %18 = vector.broadcast %17 : vector<1x512xf32> to vector<128x512xf32>
    %19 = arith.addf %16, %18 : vector<128x512xf32>
    %cst_17 = arith.constant 0.000000e+00 : f32
    %20 = vector.broadcast %cst_17 : f32 to vector<128x512xf32>
    %21 = arith.maximumf %19, %20 : vector<128x512xf32>
    %c0_18 = arith.constant 0 : index
    %c0_19 = arith.constant 0 : index
    %22 = vector.load %arg8[%c0_18, %c0_19] : memref<512x128xf32, #tpu.memory_space<vmem>>, vector<512x128xf32>
    %cst_20 = arith.constant dense<0.000000e+00> : vector<128x128xf32>
    %23 = tpu.matmul %21, %22, %cst_20 {dimension_numbers = #tpu.dot_dimension_numbers<[1], [0], [0], [1], [0, 0, 1, 1], [], []>} : vector<128x512xf32>, vector<512x128xf32>, vector<128x128xf32> -> vector<128x128xf32>
    %c0_21 = arith.constant 0 : index
    %c0_22 = arith.constant 0 : index
    %24 = vector.load %arg9[%c0_21, %c0_22] : memref<1x128xf32, #tpu.memory_space<vmem>>, vector<1x128xf32>
    %25 = vector.broadcast %24 : vector<1x128xf32> to vector<128x128xf32>
    %26 = arith.addf %23, %25 : vector<128x128xf32>
    %27 = tpu.iota {dimensions = array<i32: 1>} : vector<128x128xi32>
    %c16_i32 = arith.constant 16 : i32
    %28 = vector.broadcast %c16_i32 : i32 to vector<128x128xi32>
    %29 = arith.cmpi slt, %27, %28 : vector<128x128xi32>
    %cst_23 = arith.constant 0.000000e+00 : f32
    %30 = vector.broadcast %cst_23 : f32 to vector<128x128xf32>
    %31 = arith.select %29, %30, %26 : vector<128x128xi1>, vector<128x128xf32>
    %32 = math.exp %31 : vector<128x128xf32>
    %33 = arith.select %29, %26, %32 : vector<128x128xi1>, vector<128x128xf32>
    %c0_24 = arith.constant 0 : index
    %c0_25 = arith.constant 0 : index
    %34 = vector.load %arg10[%c0_24, %c0_25] : memref<128x128xf32, #tpu.memory_space<vmem>>, vector<128x128xf32>
    tpu.vector_store %arg10[%c0_24, %c0_25], %33 {strides = array<i32>} : memref<128x128xf32, #tpu.memory_space<vmem>>, vector<128x128xf32>,
    return
  }
  func.func @transform_0(%arg0: i32) -> (i32, i32) {
    %c0_i32 = arith.constant 0 : i32
    %c0_i32_0 = arith.constant 0 : i32
    return %arg0, %c0_i32 : i32, i32
  }
  func.func @transform_1(%arg0: i32) -> (i32, i32) {
    %c0_i32 = arith.constant 0 : i32
    %c0_i32_0 = arith.constant 0 : i32
    %c0_i32_1 = arith.constant 0 : i32
    return %c0_i32, %c0_i32_0 : i32, i32
  }
  func.func @transform_2(%arg0: i32) -> (i32, i32) {
    %c0_i32 = arith.constant 0 : i32
    %c0_i32_0 = arith.constant 0 : i32
    %c0_i32_1 = arith.constant 0 : i32
    return %c0_i32, %c0_i32_0 : i32, i32
  }
  func.func @transform_3(%arg0: i32) -> (i32, i32) {
    %c0_i32 = arith.constant 0 : i32
    %c0_i32_0 = arith.constant 0 : i32
    %c0_i32_1 = arith.constant 0 : i32
    return %c0_i32, %c0_i32_0 : i32, i32
  }
  func.func @transform_4(%arg0: i32) -> (i32, i32) {
    %c0_i32 = arith.constant 0 : i32
    %c0_i32_0 = arith.constant 0 : i32
    %c0_i32_1 = arith.constant 0 : i32
    return %c0_i32, %c0_i32_0 : i32, i32
  }
  func.func @transform_5(%arg0: i32) -> (i32, i32) {
    %c0_i32 = arith.constant 0 : i32
    %c0_i32_0 = arith.constant 0 : i32
    %c0_i32_1 = arith.constant 0 : i32
    return %c0_i32, %c0_i32_0 : i32, i32
  }
  func.func @transform_6(%arg0: i32) -> (i32, i32) {
    %c0_i32 = arith.constant 0 : i32
    %c0_i32_0 = arith.constant 0 : i32
    %c0_i32_1 = arith.constant 0 : i32
    return %c0_i32, %c0_i32_0 : i32, i32
  }
  func.func @transform_7(%arg0: i32) -> (i32, i32) {
    %c0_i32 = arith.constant 0 : i32
    %c0_i32_0 = arith.constant 0 : i32
    %c0_i32_1 = arith.constant 0 : i32
    return %c0_i32, %c0_i32_0 : i32, i32
  }
  func.func @transform_8(%arg0: i32) -> (i32, i32) {
    %c0_i32 = arith.constant 0 : i32
    %c0_i32_0 = arith.constant 0 : i32
    %c0_i32_1 = arith.constant 0 : i32
    return %c0_i32, %c0_i32_0 : i32, i32
  }
  func.func @transform_9(%arg0: i32) -> (i32, i32) {
    %c0_i32 = arith.constant 0 : i32
    %c0_i32_0 = arith.constant 0 : i32
    return %arg0, %c0_i32 : i32, i32
  }
}

</mosaic_0001>

<llo_original>
// kernel: tpu_custom_call.1
$region0: #{tpu_custom_call.1}
  #allocation0 [shape = 'u32[]', space=smem, size = 0x4, offset = 0x4, fixed_abs, tag = 'smem constant byte address 0x4 - core index']
  #allocation1 [shape = 'u32[144,128]{1,0:T(1,128)}', space=vmem, size = 0x12000, scoped, tag = 'internal scratch']
  %s0 = inlined_call_operand.vmem [shape: f32[256,32], index: 0, kind: input, shape index: {}]
  %s1 = inlined_call_operand.vmem [shape: f32[32,128], index: 1, kind: input, shape index: {}]
  %s2 = inlined_call_operand.vmem [shape: f32[1,128], index: 2, kind: input, shape index: {}]
  %s3 = inlined_call_operand.vmem [shape: f32[128,256], index: 3, kind: input, shape index: {}]
  %s4 = inlined_call_operand.vmem [shape: f32[1,256], index: 4, kind: input, shape index: {}]
  %s5 = inlined_call_operand.hbm [shape: f32[256,512], index: 5, kind: input, shape index: {}]
  %s6 = inlined_call_operand.vmem [shape: f32[1,512], index: 6, kind: input, shape index: {}]
  %s7 = inlined_call_operand.hbm [shape: f32[512,128], index: 7, kind: input, shape index: {}]
  %s8 = inlined_call_operand.vmem [shape: f32[1,128], index: 8, kind: input, shape index: {}]
  %s9 = inlined_call_operand.hbm [shape: f32[256,128], index: 9, kind: output, shape index: {}]
  %s10 = sld [smem:[#allocation0]]
  $region77: #{tpu_custom_call.1} parent=0
    _
  %s12 = ssub.s32 1, %s10
  %s13 = scalar_select 0, %s12, %s10
  $region1: #{tpu_custom_call.1} parent=0
    #allocation2 [shape = 'u8[524288]{0}', space=vmem, size = 0x80000, scoped, tag = 'input window, operand 5, single buffered']
    #allocation3 [shape = 's32[2]{0}', space=sflag, size = 0x8, scoped, tag = 'scoped memory for tpu_custom_call.1']
    #allocation4 [shape = 's32[2]{0}', space=sflag, size = 0x8, scoped, tag = 'scoped memory for tpu_custom_call.1']
    #allocation5 [shape = 'u8[262144]{0}', space=vmem, size = 0x40000, scoped, tag = 'input window, operand 7, single buffered']
    #allocation6 [shape = 's32[1]{0}', space=sflag, size = 0x4, scoped, tag = 'scoped memory for tpu_custom_call.1']
    #allocation7 [shape = 'u8[131072]{0}', space=vmem, size = 0x20000, scoped, tag = 'output window, operand 0']
    %14 = vsyncpa [#allocation3], 0
    %15 = vsyncpa [#allocation6], 0
    %16 = vsyncpa [#allocation4], 0
    %s17 = scalar_lea.sflag [#allocation4], 1
    %18 = vsyncpa %s17, 0
    loop: start=0, step=1, limit=4
    $region2: #{tpu_custom_call.1} parent=1 // loop_pre_header
      _
    $region3: #{tpu_custom_call.1} parent=1 // loop_header
      %s20 = sphi 0, %s24
      %p21 = scmp.ge.s32.totalorder %s20, 4
      %s30 = sphi 0, %s32
      %s33 = sphi 0, %s30
      %s34 = sphi 0, %s33
      %s50 = sphi 0, %s34
      %s54 = sphi 0, %s54
      %s56 = sphi 0, %s54
      %s57 = sphi 0, %s56
      %s71 = sphi 0, %s57
      %s75 = sphi 0, %s75
      %s77 = sphi 0, %s75
      %s78 = sphi 0, %s77
      %s92 = sphi 0, %s78
      %s96 = sphi 0, %s96
      %s98 = sphi 0, %s96
      %s99 = sphi 0, %s98
      %s113 = sphi 0, %s99
      %s117 = sphi 0, %s117
      %s119 = sphi 0, %s117
      %s120 = sphi 0, %s119
      %s134 = sphi 0, %s120
      %s138 = sphi 0, %s138
      %s140 = sphi 0, %s138
      %s141 = sphi 0, %s140
      %s155 = sphi 0, %s141
      %s159 = sphi 0, %s159
      %s161 = sphi 0, %s159
      %s162 = sphi 0, %s161
      %s176 = sphi 0, %s162
      %s180 = sphi 0, %s180
      %s182 = sphi 0, %s180
      %s183 = sphi 0, %s182
      %s197 = sphi 0, %s183
      %s201 = sphi 0, %s201
      %s203 = sphi 0, %s201
      %s204 = sphi 0, %s203
      %s218 = sphi 0, %s204
      %s224 = sphi 0, %s226
      %s227 = sphi 0, %s224
      %s228 = sphi 0, %s227
      %s244 = sphi 0, %s228
    $region4: #{tpu_custom_call.1} parent=1 // loop_header_branch
      %23 = sbr.rel (%p21) target = $region8
    $region5: #{tpu_custom_call.1} parent=1 // loop_body
      %s25 = ssub.s32 %s20, 1
      %s26 = ssub.s32 %s20, 2
      %s27 = sadd.s32 %s20, 1
      %s28 = ssub.s32 %s20, %s27
      %p29 = scmp.eq.s32.totalorder %s28, 0
      %s31 = sadd.s32 %s30, 1
      %s32 = scalar_select %p29, %s30, %s31
      %p35 = pneg %p29
      %p36 = scmp.eq.s32.totalorder %s20, 1
      %p37 = por %p35, %p36
      %p38 = scmp.ne.s32.totalorder %s30, %s33
      %p39 = scmp.eq.s32.totalorder %s20, 0
      %p40 = por %p38, %p39
      %p41 = scmp.ne.s32.totalorder %s30, %s33
      %p42 = scmp.eq.s32.totalorder %s25, 1
      %p43 = por %p41, %p42
      %p44 = scmp.ne.s32.totalorder %s33, %s34
      %p45 = scmp.eq.s32.totalorder %s25, 0
      %p46 = por %p44, %p45
      %p47 = scmp.ne.s32.totalorder %s33, %s34
      %p48 = scmp.eq.s32.totalorder %s26, 1
      %p49 = por %p47, %p48
      %p51 = scmp.ne.s32.totalorder %s34, %s50
      %p52 = scmp.eq.s32.totalorder %s26, 0
      %p53 = por %p51, %p52
      %s55 = sadd.s32 %s54, 1
      %p58 = scmp.eq.s32.totalorder %s20, 1
      %p59 = scmp.ne.s32.totalorder %s54, %s56
      %p60 = scmp.eq.s32.totalorder %s20, 0
      %p61 = por %p59, %p60
      %p62 = scmp.ne.s32.totalorder %s54, %s56
      %p63 = scmp.eq.s32.totalorder %s25, 1
      %p64 = por %p62, %p63
      %p65 = scmp.ne.s32.totalorder %s56, %s57
      %p66 = scmp.eq.s32.totalorder %s25, 0
      %p67 = por %p65, %p66
      %p68 = scmp.ne.s32.totalorder %s56, %s57
      %p69 = scmp.eq.s32.totalorder %s26, 1
      %p70 = por %p68, %p69
      %p72 = scmp.ne.s32.totalorder %s57, %s71
      %p73 = scmp.eq.s32.totalorder %s26, 0
      %p74 = por %p72, %p73
      %s76 = sadd.s32 %s75, 1
      %p79 = scmp.eq.s32.totalorder %s20, 1
      %p80 = scmp.ne.s32.totalorder %s75, %s77
      %p81 = scmp.eq.s32.totalorder %s20, 0
      %p82 = por %p80, %p81
      %p83 = scmp.ne.s32.totalorder %s75, %s77
      %p84 = scmp.eq.s32.totalorder %s25, 1
      %p85 = por %p83, %p84
      %p86 = scmp.ne.s32.totalorder %s77, %s78
      %p87 = scmp.eq.s32.totalorder %s25, 0
      %p88 = por %p86, %p87
      %p89 = scmp.ne.s32.totalorder %s77, %s78
      %p90 = scmp.eq.s32.totalorder %s26, 1
      %p91 = por %p89, %p90
      %p93 = scmp.ne.s32.totalorder %s78, %s92
      %p94 = scmp.eq.s32.totalorder %s26, 0
      %p95 = por %p93, %p94
      %s97 = sadd.s32 %s96, 1
      %p100 = scmp.eq.s32.totalorder %s20, 1
      %p101 = scmp.ne.s32.totalorder %s96, %s98
      %p102 = scmp.eq.s32.totalorder %s20, 0
      %p103 = por %p101, %p102
      %p104 = scmp.ne.s32.totalorder %s96, %s98
      %p105 = scmp.eq.s32.totalorder %s25, 1
      %p106 = por %p104, %p105
      %p107 = scmp.ne.s32.totalorder %s98, %s99
      %p108 = scmp.eq.s32.totalorder %s25, 0
      %p109 = por %p107, %p108
      %p110 = scmp.ne.s32.totalorder %s98, %s99
      %p111 = scmp.eq.s32.totalorder %s26, 1
      %p112 = por %p110, %p111
      %p114 = scmp.ne.s32.totalorder %s99, %s113
      %p115 = scmp.eq.s32.totalorder %s26, 0
      %p116 = por %p114, %p115
      %s118 = sadd.s32 %s117, 1
      %p121 = scmp.eq.s32.totalorder %s20, 1
      %p122 = scmp.ne.s32.totalorder %s117, %s119
      %p123 = scmp.eq.s32.totalorder %s20, 0
      %p124 = por %p122, %p123
      %p125 = scmp.ne.s32.totalorder %s117, %s119
      %p126 = scmp.eq.s32.totalorder %s25, 1
      %p127 = por %p125, %p126
      %p128 = scmp.ne.s32.totalorder %s119, %s120
      %p129 = scmp.eq.s32.totalorder %s25, 0
      %p130 = por %p128, %p129
      %p131 = scmp.ne.s32.totalorder %s119, %s120
      %p132 = scmp.eq.s32.totalorder %s26, 1
      %p133 = por %p131, %p132
      %p135 = scmp.ne.s32.totalorder %s120, %s134
      %p136 = scmp.eq.s32.totalorder %s26, 0
      %p137 = por %p135, %p136
      %s139 = sadd.s32 %s138, 1
      %p142 = scmp.eq.s32.totalorder %s20, 1
      %p143 = scmp.ne.s32.totalorder %s138, %s140
      %p144 = scmp.eq.s32.totalorder %s20, 0
      %p145 = por %p143, %p144
      %p146 = scmp.ne.s32.totalorder %s138, %s140
      %p147 = scmp.eq.s32.totalorder %s25, 1
      %p148 = por %p146, %p147
      %p149 = scmp.ne.s32.totalorder %s140, %s141
      %p150 = scmp.eq.s32.totalorder %s25, 0
      %p151 = por %p149, %p150
      %p152 = scmp.ne.s32.totalorder %s140, %s141
      %p153 = scmp.eq.s32.totalorder %s26, 1
      %p154 = por %p152, %p153
      %p156 = scmp.ne.s32.totalorder %s141, %s155
      %p157 = scmp.eq.s32.totalorder %s26, 0
      %p158 = por %p156, %p157
      %s160 = sadd.s32 %s159, 1
      %p163 = scmp.eq.s32.totalorder %s20, 1
      %p164 = scmp.ne.s32.totalorder %s159, %s161
      %p165 = scmp.eq.s32.totalorder %s20, 0
      %p166 = por %p164, %p165
      %p167 = scmp.ne.s32.totalorder %s159, %s161
      %p168 = scmp.eq.s32.totalorder %s25, 1
      %p169 = por %p167, %p168
      %p170 = scmp.ne.s32.totalorder %s161, %s162
      %p171 = scmp.eq.s32.totalorder %s25, 0
      %p172 = por %p170, %p171
      %p173 = scmp.ne.s32.totalorder %s161, %s162
      %p174 = scmp.eq.s32.totalorder %s26, 1
      %p175 = por %p173, %p174
      %p177 = scmp.ne.s32.totalorder %s162, %s176
      %p178 = scmp.eq.s32.totalorder %s26, 0
      %p179 = por %p177, %p178
      %s181 = sadd.s32 %s180, 1
      %p184 = scmp.eq.s32.totalorder %s20, 1
      %p185 = scmp.ne.s32.totalorder %s180, %s182
      %p186 = scmp.eq.s32.totalorder %s20, 0
      %p187 = por %p185, %p186
      %p188 = scmp.ne.s32.totalorder %s180, %s182
      %p189 = scmp.eq.s32.totalorder %s25, 1
      %p190 = por %p188, %p189
      %p191 = scmp.ne.s32.totalorder %s182, %s183
      %p192 = scmp.eq.s32.totalorder %s25, 0
      %p193 = por %p191, %p192
      %p194 = scmp.ne.s32.totalorder %s182, %s183
      %p195 = scmp.eq.s32.totalorder %s26, 1
      %p196 = por %p194, %p195
      %p198 = scmp.ne.s32.totalorder %s183, %s197
      %p199 = scmp.eq.s32.totalorder %s26, 0
      %p200 = por %p198, %p199
      %s202 = sadd.s32 %s201, 1
      %p205 = scmp.eq.s32.totalorder %s20, 1
      %p206 = scmp.ne.s32.totalorder %s201, %s203
      %p207 = scmp.eq.s32.totalorder %s20, 0
      %p208 = por %p206, %p207
      %p209 = scmp.ne.s32.totalorder %s201, %s203
      %p210 = scmp.eq.s32.totalorder %s25, 1
      %p211 = por %p209, %p210
      %p212 = scmp.ne.s32.totalorder %s203, %s204
      %p213 = scmp.eq.s32.totalorder %s25, 0
      %p214 = por %p212, %p213
      %p215 = scmp.ne.s32.totalorder %s203, %s204
      %p216 = scmp.eq.s32.totalorder %s26, 1
      %p217 = por %p215, %p216
      %p219 = scmp.ne.s32.totalorder %s204, %s218
      %p220 = scmp.eq.s32.totalorder %s26, 0
      %p221 = por %p219, %p220
      %s222 = ssub.s32 %s20, %s27
      %p223 = scmp.eq.s32.totalorder %s222, 0
      %s225 = sadd.s32 %s224, 1
      %s226 = scalar_select %p223, %s224, %s225
      %p229 = pneg %p223
      %p230 = scmp.eq.s32.totalorder %s20, 1
      %p231 = por %p229, %p230
      %p232 = scmp.ne.s32.totalorder %s224, %s227
      %p233 = scmp.eq.s32.totalorder %s20, 0
      %p234 = por %p232, %p233
      %p235 = scmp.ne.s32.totalorder %s224, %s227
      %p236 = scmp.eq.s32.totalorder %s25, 1
      %p237 = por %p235, %p236
      %p238 = scmp.ne.s32.totalorder %s227, %s228
      %p239 = scmp.eq.s32.totalorder %s25, 0
      %p240 = por %p238, %p239
      %p241 = scmp.ne.s32.totalorder %s227, %s228
      %p242 = scmp.eq.s32.totalorder %s26, 1
      %p243 = por %p241, %p242
      %p245 = scmp.ne.s32.totalorder %s228, %s244
      %p246 = scmp.eq.s32.totalorder %s26, 0
      %p247 = por %p245, %p246
      %p248 = scmp.le.s32.totalorder 1, %s20
      %p249 = scmp.lt.s32.totalorder %s20, 3
      %p250 = pnand %p248, %p249
      %p251 = pneg %p250
      // Predicated region
      $region9: #{tpu_custom_call.1} parent=5 // pred_check
        _
      $region10: #{tpu_custom_call.1} parent=5 // pred_check_branch
        %253 = sbr.rel (%p250) target = $region12
      $region11: #{tpu_custom_call.1} parent=5 // pred_region
        %s254 = ssub.s32 %s20, 1
        // Predicated region
        $region13: #{tpu_custom_call.1} parent=11 // pred_check
          %p255 = pneg %p67
        $region14: #{tpu_custom_call.1} parent=11 // pred_check_branch
          %257 = sbr.rel (%p255) target = $region16
        $region15: #{tpu_custom_call.1} parent=11 // pred_region
          _
        $region16: #{tpu_custom_call.1} parent=11 // pred_fallthru
          _
        // Predicated region
        $region17: #{tpu_custom_call.1} parent=11 // pred_check
          %p258 = pneg %p88
        $region18: #{tpu_custom_call.1} parent=11 // pred_check_branch
          %260 = sbr.rel (%p258) target = $region20
        $region19: #{tpu_custom_call.1} parent=11 // pred_region
          _
        $region20: #{tpu_custom_call.1} parent=11 // pred_fallthru
          _
        // Predicated region
        $region21: #{tpu_custom_call.1} parent=11 // pred_check
          %p261 = pneg %p109
        $region22: #{tpu_custom_call.1} parent=11 // pred_check_branch
          %263 = sbr.rel (%p261) target = $region24
        $region23: #{tpu_custom_call.1} parent=11 // pred_region
          _
        $region24: #{tpu_custom_call.1} parent=11 // pred_fallthru
          _
        // Predicated region
        $region25: #{tpu_custom_call.1} parent=11 // pred_check
          %p264 = pneg %p130
        $region26: #{tpu_custom_call.1} parent=11 // pred_check_branch
          %266 = sbr.rel (%p264) target = $region28
        $region27: #{tpu_custom_call.1} parent=11 // pred_region
          _
        $region28: #{tpu_custom_call.1} parent=11 // pred_fallthru
          _
        // Predicated region
        $region29: #{tpu_custom_call.1} parent=11 // pred_check
          %p267 = pneg %p151
        $region30: #{tpu_custom_call.1} parent=11 // pred_check_branch
          %269 = sbr.rel (%p267) target = $region32
        $region31: #{tpu_custom_call.1} parent=11 // pred_region
          %s271 = ssub.s32 16384, 16384
          %272 = vsyncadd [#allocation3], %s271
          %s273 = sshll.u32 [#allocation2], 4
          %s274 = int_to_ptr.vmem [resolvable:$true] %s273
          %279 = dma.hbm_to_vmem [thread:$0]  %s5, 16384, %s274, [#allocation3], 512, 512, 32
        $region32: #{tpu_custom_call.1} parent=11 // pred_fallthru
          _
        // Predicated region
        $region33: #{tpu_custom_call.1} parent=11 // pred_check
          %p280 = pneg %p172
        $region34: #{tpu_custom_call.1} parent=11 // pred_check_branch
          %282 = sbr.rel (%p280) target = $region36
        $region35: #{tpu_custom_call.1} parent=11 // pred_region
          _
        $region36: #{tpu_custom_call.1} parent=11 // pred_fallthru
          _
        // Predicated region
        $region37: #{tpu_custom_call.1} parent=11 // pred_check
          %p283 = pneg %p193
        $region38: #{tpu_custom_call.1} parent=11 // pred_check_branch
          %285 = sbr.rel (%p283) target = $region40
        $region39: #{tpu_custom_call.1} parent=11 // pred_region
          %s287 = ssub.s32 8192, 8192
          %288 = vsyncadd [#allocation6], %s287
          %s289 = sshll.u32 [#allocation5], 4
          %s290 = int_to_ptr.vmem [resolvable:$true] %s289
          %295 = dma.hbm_to_vmem [thread:$0]  %s7, 8192, %s290, [#allocation6], 128, 128, 8
        $region40: #{tpu_custom_call.1} parent=11 // pred_fallthru
          _
        // Predicated region
        $region41: #{tpu_custom_call.1} parent=11 // pred_check
          %p296 = pneg %p214
        $region42: #{tpu_custom_call.1} parent=11 // pred_check_branch
          %298 = sbr.rel (%p296) target = $region44
        $region43: #{tpu_custom_call.1} parent=11 // pred_region
          _
        $region44: #{tpu_custom_call.1} parent=11 // pred_fallthru
          _
      $region12: #{tpu_custom_call.1} parent=5 // pred_fallthru
        _
      %p299 = scmp.lt.s32.totalorder %s20, 2
      // Predicated region
      $region45: #{tpu_custom_call.1} parent=5 // pred_check
        %p300 = pneg %p299
      $region46: #{tpu_custom_call.1} parent=5 // pred_check_branch
        %302 = sbr.rel (%p300) target = $region48
      $region47: #{tpu_custom_call.1} parent=5 // pred_region
        // Predicated region
        $region49: #{tpu_custom_call.1} parent=47 // pred_check
          %p303 = pneg %p40
        $region50: #{tpu_custom_call.1} parent=47 // pred_check_branch
          %305 = sbr.rel (%p303) target = $region52
        $region51: #{tpu_custom_call.1} parent=47 // pred_region
          %s306 = smul.u32 16, %s20
          %p307 = scmp.lt.s32.totalorder %s306, 31
          %s308 = scalar_select %p307, %s306, 31
          %s309 = smul.addr %s308, 8
          %s310 = scalar_lea.vmem %s0, %s309
          %s311 = smul.u32 16, %s20
        $region52: #{tpu_custom_call.1} parent=47 // pred_fallthru
          _
      $region48: #{tpu_custom_call.1} parent=5 // pred_fallthru
        _
      %p312 = scmp.le.s32.totalorder 1, %s20
      %p313 = scmp.lt.s32.totalorder %s20, 3
      %p314 = pnand %p312, %p313
      %p315 = pneg %p314
      // Predicated region
      $region53: #{tpu_custom_call.1} parent=5 // pred_check
        _
      $region54: #{tpu_custom_call.1} parent=5 // pred_check_branch
        %317 = sbr.rel (%p314) target = $region56
      $region55: #{tpu_custom_call.1} parent=5 // pred_region
        %s318 = ssub.s32 %s20, 1
        // Predicated region
        $region57: #{tpu_custom_call.1} parent=55 // pred_check
          %p319 = pneg %p151
        $region58: #{tpu_custom_call.1} parent=55 // pred_check_branch
          %321 = sbr.rel (%p319) target = $region60
        $region59: #{tpu_custom_call.1} parent=55 // pred_region
          %322 = dma.done [#allocation3], 16384
        $region60: #{tpu_custom_call.1} parent=55 // pred_fallthru
          _
        // Predicated region
        $region61: #{tpu_custom_call.1} parent=55 // pred_check
          %p323 = pneg %p193
        $region62: #{tpu_custom_call.1} parent=55 // pred_check_branch
          %325 = sbr.rel (%p323) target = $region64
        $region63: #{tpu_custom_call.1} parent=55 // pred_region
          %326 = dma.done [#allocation6], 8192
        $region64: #{tpu_custom_call.1} parent=55 // pred_fallthru
          _
        %s327 = smul.u32 16, %s25
        %p328 = scmp.lt.s32.totalorder %s327, 31
        %s329 = scalar_select %p328, %s327, 31
        %s330 = smul.addr %s329, 8
        %s331 = scalar_lea.vmem %s0, %s330
        %p332 = pneg %p46
        %p333 = pneg %p43
        %p334 = pneg %p67
        %p335 = pneg %p64
        %p336 = pneg %p88
        %p337 = pneg %p85
        %p338 = pneg %p109
        %p339 = pneg %p106
        %p340 = pneg %p130
        %p341 = pneg %p127
        %p342 = pneg %p151
        %p343 = pneg %p148
        %p344 = pneg %p172
        %p345 = pneg %p169
        %p346 = pneg %p193
        %p347 = pneg %p190
        %p348 = pneg %p214
        %p349 = pneg %p211
        %p350 = pneg %p240
        %p351 = pneg %p237
        %s352 = sand.u32 %s227, 1
        %s353 = scalar_lea.sflag [#allocation4], %s352
        %s354 = sand.u32 %s227, 1
        %s355 = smul.addr %s354, 128
        %s356 = scalar_lea.vmem [#allocation7], %s355
        %s357 = smul.u32 16, %s25
        %p358 = scmp.lt.s32.totalorder %s357, 31
        %s359 = scalar_select %p358, %s357, 31
        %s360 = smul.addr %s359, 8
        %s361 = scalar_lea.vmem %s0, %s360
        %s362 = smul.u32 16, %s25
        %s363 = smul.u32 16, %s25
        %v364 = vld [vmem:[%s361] sm:$0xff]
        %v365 = vld [vmem:[%s361 + $0x8] sm:$0xff]
        %v366 = vld [vmem:[%s361 + $0x10] sm:$0xff]
        %v367 = vld [vmem:[%s361 + $0x18] sm:$0xff]
        %v368 = vld [vmem:[%s361 + $0x20] sm:$0xff]
        %v369 = vld [vmem:[%s361 + $0x28] sm:$0xff]
        %v370 = vld [vmem:[%s361 + $0x30] sm:$0xff]
        %v371 = vld [vmem:[%s361 + $0x38] sm:$0xff]
        %v372 = vld [vmem:[%s361 + $0x40] sm:$0xff]
        %v373 = vld [vmem:[%s361 + $0x48] sm:$0xff]
        %v374 = vld [vmem:[%s361 + $0x50] sm:$0xff]
        %v375 = vld [vmem:[%s361 + $0x58] sm:$0xff]
        %v376 = vld [vmem:[%s361 + $0x60] sm:$0xff]
        %v377 = vld [vmem:[%s361 + $0x68] sm:$0xff]
        %v378 = vld [vmem:[%s361 + $0x70] sm:$0xff]
        %v379 = vld [vmem:[%s361 + $0x78] sm:$0xff]
        %v380 = vld [vmem:[%s1] sm:$0xff]
        %v381 = vld [vmem:[%s1 + $0x8] sm:$0xff]
        %v382 = vld [vmem:[%s1 + $0x10] sm:$0xff]
        %v383 = vld [vmem:[%s1 + $0x18] sm:$0xff]
        %v384 = vld [vmem:[%s2] sm:$0x1]
        %v386 = vlaneseq
        %v387 = vshrl.u32 %v386, 7
        %v388 = vsub.s32 0, %v387
        %v389 = vrot.slane %v384, %v388
        %vm391 = vcmask 261120
        %v393 = vsel %vm391, %v364, 0
        %v396 = vsel %vm391, %v365, 0
        %v399 = vsel %vm391, %v366, 0
        %v402 = vsel %vm391, %v367, 0
        %v405 = vsel %vm391, %v368, 0
        %v408 = vsel %vm391, %v369, 0
        %v411 = vsel %vm391, %v370, 0
        %v414 = vsel %vm391, %v371, 0
        %v417 = vsel %vm391, %v372, 0
        %v420 = vsel %vm391, %v373, 0
        %v423 = vsel %vm391, %v374, 0
        %v426 = vsel %vm391, %v375, 0
        %v429 = vsel %vm391, %v376, 0
        %v432 = vsel %vm391, %v377, 0
        %v435 = vsel %vm391, %v378, 0
        %v438 = vsel %vm391, %v379, 0
        %440 = vmatprep.subr.mxu0 0.0
        %441 = vmatpush1.msra.mxu0 0.0
        %442 = vmatprep.subr.mxu0 0.0
        %443 = vmatpush1.msra.mxu0 0.0
        %444 = vmatprep.subr.mxu0 0.0
        %445 = vmatpush1.msra.mxu0 0.0
        %446 = vmatprep.subr.mxu0 0.0
        %447 = vmatpush1.msra.mxu0 0.0
        %448 = vmatprep.subr.mxu0 0.0
        %449 = vmatpush1.msra.mxu0 0.0
        %450 = vmatprep.subr.mxu0 0.0
        %451 = vmatpush1.msra.mxu0 0.0
        %452 = vmatprep.subr.mxu0 0.0
        %453 = vmatpush1.msra.mxu0 0.0
        %454 = vmatprep.subr.mxu0 0.0
        %455 = vmatpush1.msra.mxu0 0.0
        %456 = vmatprep.subr.mxu0 0.0
        %457 = vmatpush1.msra.mxu0 0.0
        %458 = vmatprep.subr.mxu0 0.0
        %459 = vmatpush1.msra.mxu0 0.0
        %460 = vmatprep.subr.mxu0 0.0
        %461 = vmatpush1.msra.mxu0 0.0
        %462 = vmatprep.subr.mxu0 0.0
        %463 = vmatpush1.msra.mxu0 0.0
        %464 = vmatprep.subr.mxu0 0.0
        %465 = vmatpush1.msra.mxu0 %v383
        %466 = vmatprep.subr.mxu0 0.0
        %467 = vmatpush1.msra.mxu0 %v382
        %468 = vmatprep.subr.mxu0 0.0
        %469 = vmatpush1.msra.mxu0 %v381
        %470 = vmatprep.subr.mxu0 0.0
        %471 = vmatpush1.msra.mxu0 %v380
        %472 = vmatprep.subr.mxu0 0.0
        %473 = vmatpush2.msra.mxu0 0.0
        %474 = vmatprep.subr.mxu0 0.0
        %475 = vmatpush2.msra.mxu0 0.0
        %476 = vmatprep.subr.mxu0 0.0
        %477 = vmatpush2.msra.mxu0 0.0
        %478 = vmatprep.subr.mxu0 0.0
        %479 = vmatpush2.msra.mxu0 0.0
        %480 = vmatprep.subr.mxu0 0.0
        %481 = vmatpush2.msra.mxu0 0.0
        %482 = vmatprep.subr.mxu0 0.0
        %483 = vmatpush2.msra.mxu0 0.0
        %484 = vmatprep.subr.mxu0 0.0
        %485 = vmatpush2.msra.mxu0 0.0
        %486 = vmatprep.subr.mxu0 0.0
        %487 = vmatpush2.msra.mxu0 0.0
        %488 = vmatprep.subr.mxu0 0.0
        %489 = vmatpush2.msra.mxu0 0.0
        %490 = vmatprep.subr.mxu0 0.0
        %491 = vmatpush2.msra.mxu0 0.0
        %492 = vmatprep.subr.mxu0 0.0
        %493 = vmatpush2.msra.mxu0 0.0
        %494 = vmatprep.subr.mxu0 0.0
        %495 = vmatpush2.msra.mxu0 0.0
        %496 = vmatprep.subr.mxu0 0.0
        %497 = vmatpush2.msra.mxu0 0.0
        %498 = vmatprep.subr.mxu0 0.0
        %499 = vmatpush2.msra.mxu0 0.0
        %500 = vmatprep.subr.mxu0 0.0
        %501 = vmatpush2.msra.mxu0 0.0
        %502 = vmatprep.subr.mxu0 0.0
        %503 = vmatpush2.msra.mxu0 0.0
        %504 = vmatprep.mubr.f32.mxu0 0.0
        %505 = vmatmul.mubr.f32.gmra.mxu0 %v393
        %v506 = vpop.f32.mrf.mxu0
        %v507 = vadd.f32 %v389, %v506
        %v508 = vpop.f32.mrf.mxu0
        %509 = vmatprep.mubr.f32.mxu0 0.0
        %510 = vmatmul.mubr.f32.gmra.mxu0 %v396
        %v511 = vpop.f32.mrf.mxu0
        %v512 = vadd.f32 %v389, %v511
        %v513 = vpop.f32.mrf.mxu0
        %514 = vmatprep.mubr.f32.mxu0 0.0
        %515 = vmatmul.mubr.f32.gmra.mxu0 %v399
        %v516 = vpop.f32.mrf.mxu0
        %v517 = vadd.f32 %v389, %v516
        %v518 = vpop.f32.mrf.mxu0
        %519 = vmatprep.mubr.f32.mxu0 0.0
        %520 = vmatmul.mubr.f32.gmra.mxu0 %v402
        %v521 = vpop.f32.mrf.mxu0
        %v522 = vadd.f32 %v389, %v521
        %v523 = vpop.f32.mrf.mxu0
        %524 = vmatprep.mubr.f32.mxu0 0.0
        %525 = vmatmul.mubr.f32.gmra.mxu0 %v405
        %v526 = vpop.f32.mrf.mxu0
        %v527 = vadd.f32 %v389, %v526
        %v528 = vpop.f32.mrf.mxu0
        %529 = vmatprep.mubr.f32.mxu0 0.0
        %530 = vmatmul.mubr.f32.gmra.mxu0 %v408
        %v531 = vpop.f32.mrf.mxu0
        %v532 = vadd.f32 %v389, %v531
        %v533 = vpop.f32.mrf.mxu0
        %534 = vmatprep.mubr.f32.mxu0 0.0
        %535 = vmatmul.mubr.f32.gmra.mxu0 %v411
        %v536 = vpop.f32.mrf.mxu0
        %v537 = vadd.f32 %v389, %v536
        %v538 = vpop.f32.mrf.mxu0
        %539 = vmatprep.mubr.f32.mxu0 0.0
        %540 = vmatmul.mubr.f32.gmra.mxu0 %v414
        %v541 = vpop.f32.mrf.mxu0
        %v542 = vadd.f32 %v389, %v541
        %v543 = vpop.f32.mrf.mxu0
        %544 = vmatprep.mubr.f32.mxu0 0.0
        %545 = vmatmul.mubr.f32.gmra.mxu0 %v417
        %v546 = vpop.f32.mrf.mxu0
        %v547 = vadd.f32 %v389, %v546
        %v548 = vpop.f32.mrf.mxu0
        %549 = vmatprep.mubr.f32.mxu0 0.0
        %550 = vmatmul.mubr.f32.gmra.mxu0 %v420
        %v551 = vpop.f32.mrf.mxu0
        %v552 = vadd.f32 %v389, %v551
        %v553 = vpop.f32.mrf.mxu0
        %554 = vmatprep.mubr.f32.mxu0 0.0
        %555 = vmatmul.mubr.f32.gmra.mxu0 %v423
        %v556 = vpop.f32.mrf.mxu0
        %v557 = vadd.f32 %v389, %v556
        %v558 = vpop.f32.mrf.mxu0
        %559 = vmatprep.mubr.f32.mxu0 0.0
        %560 = vmatmul.mubr.f32.gmra.mxu0 %v426
        %v561 = vpop.f32.mrf.mxu0
        %v562 = vadd.f32 %v389, %v561
        %v563 = vpop.f32.mrf.mxu0
        %564 = vmatprep.mubr.f32.mxu0 0.0
        %565 = vmatmul.mubr.f32.gmra.mxu0 %v429
        %v566 = vpop.f32.mrf.mxu0
        %v567 = vadd.f32 %v389, %v566
        %v568 = vpop.f32.mrf.mxu0
        %569 = vmatprep.mubr.f32.mxu0 0.0
        %570 = vmatmul.mubr.f32.gmra.mxu0 %v432
        %v571 = vpop.f32.mrf.mxu0
        %v572 = vadd.f32 %v389, %v571
        %v573 = vpop.f32.mrf.mxu0
        %574 = vmatprep.mubr.f32.mxu0 0.0
        %575 = vmatmul.mubr.f32.gmra.mxu0 %v435
        %v576 = vpop.f32.mrf.mxu0
        %v577 = vadd.f32 %v389, %v576
        %v578 = vpop.f32.mrf.mxu0
        %579 = vmatprep.mubr.f32.mxu0 0.0
        %580 = vmatmul.mubr.f32.gmra.mxu0 %v438
        %v581 = vpop.f32.mrf.mxu0
        %v582 = vadd.f32 %v389, %v581
        %v583 = vpop.f32.mrf.mxu0
        %584 = vdwg.mxu0
        %v585 = vmax.f32 %v507, 0.0
        %v586 = vmax.f32 %v512, 0.0
        %v587 = vmax.f32 %v517, 0.0
        %v588 = vmax.f32 %v522, 0.0
        %v589 = vmax.f32 %v527, 0.0
        %v590 = vmax.f32 %v532, 0.0
        %v591 = vmax.f32 %v537, 0.0
        %v592 = vmax.f32 %v542, 0.0
        %v593 = vmax.f32 %v547, 0.0
        %v594 = vmax.f32 %v552, 0.0
        %v595 = vmax.f32 %v557, 0.0
        %v596 = vmax.f32 %v562, 0.0
        %v597 = vmax.f32 %v567, 0.0
        %v598 = vmax.f32 %v572, 0.0
        %v599 = vmax.f32 %v577, 0.0
        %v600 = vmax.f32 %v582, 0.0
        %v601 = vld [vmem:[%s3] sm:$0xff]
        %v602 = vld [vmem:[%s3 + $0x8] sm:$0xff]
        %v603 = vld [vmem:[%s3 + $0x10] sm:$0xff]
        %v604 = vld [vmem:[%s3 + $0x18] sm:$0xff]
        %v605 = vld [vmem:[%s3 + $0x20] sm:$0xff]
        %v606 = vld [vmem:[%s3 + $0x28] sm:$0xff]
        %v607 = vld [vmem:[%s3 + $0x30] sm:$0xff]
        %v608 = vld [vmem:[%s3 + $0x38] sm:$0xff]
        %v609 = vld [vmem:[%s3 + $0x40] sm:$0xff]
        %v610 = vld [vmem:[%s3 + $0x48] sm:$0xff]
        %v611 = vld [vmem:[%s3 + $0x50] sm:$0xff]
        %v612 = vld [vmem:[%s3 + $0x58] sm:$0xff]
        %v613 = vld [vmem:[%s3 + $0x60] sm:$0xff]
        %v614 = vld [vmem:[%s3 + $0x68] sm:$0xff]
        %v615 = vld [vmem:[%s3 + $0x70] sm:$0xff]
        %v616 = vld [vmem:[%s3 + $0x78] sm:$0xff]
        %v617 = vld [vmem:[%s3 + $0x80] sm:$0xff]
        %v618 = vld [vmem:[%s3 + $0x88] sm:$0xff]
        %v619 = vld [vmem:[%s3 + $0x90] sm:$0xff]
        %v620 = vld [vmem:[%s3 + $0x98] sm:$0xff]
        %v621 = vld [vmem:[%s3 + $0xa0] sm:$0xff]
        %v622 = vld [vmem:[%s3 + $0xa8] sm:$0xff]
        %v623 = vld [vmem:[%s3 + $0xb0] sm:$0xff]
        %v624 = vld [vmem:[%s3 + $0xb8] sm:$0xff]
        %v625 = vld [vmem:[%s3 + $0xc0] sm:$0xff]
        %v626 = vld [vmem:[%s3 + $0xc8] sm:$0xff]
        %v627 = vld [vmem:[%s3 + $0xd0] sm:$0xff]
        %v628 = vld [vmem:[%s3 + $0xd8] sm:$0xff]
        %v629 = vld [vmem:[%s3 + $0xe0] sm:$0xff]
        %v630 = vld [vmem:[%s3 + $0xe8] sm:$0xff]
        %v631 = vld [vmem:[%s3 + $0xf0] sm:$0xff]
        %v632 = vld [vmem:[%s3 + $0xf8] sm:$0xff]
        %v633 = vld [vmem:[%s4] sm:$0x3]
        %v635 = vlaneseq
        %v636 = vshrl.u32 %v635, 7
        %v637 = vsub.s32 0, %v636
        %v638 = vrot.slane %v633, %v637
        %v639 = vlaneseq
        %v640 = vshrl.u32 %v639, 7
        %v641 = vsub.s32 1, %v640
        %v642 = vrot.slane %v633, %v641
        %645 = vmatprep.subr.mxu0 %v632
        %646 = vmatpush1.msra.mxu0 %v631
        %647 = vmatprep.subr.mxu0 %v630
        %648 = vmatpush1.msra.mxu0 %v629
        %649 = vmatprep.subr.mxu0 %v628
        %650 = vmatpush1.msra.mxu0 %v627
        %651 = vmatprep.subr.mxu0 %v626
        %652 = vmatpush1.msra.mxu0 %v625
        %653 = vmatprep.subr.mxu0 %v624
        %654 = vmatpush1.msra.mxu0 %v623
        %655 = vmatprep.subr.mxu0 %v622
        %656 = vmatpush1.msra.mxu0 %v621
        %657 = vmatprep.subr.mxu0 %v620
        %658 = vmatpush1.msra.mxu0 %v619
        %659 = vmatprep.subr.mxu0 %v618
        %660 = vmatpush1.msra.mxu0 %v617
        %661 = vmatprep.subr.mxu0 %v616
        %662 = vmatpush1.msra.mxu0 %v615
        %663 = vmatprep.subr.mxu0 %v614
        %664 = vmatpush1.msra.mxu0 %v613
        %665 = vmatprep.subr.mxu0 %v612
        %666 = vmatpush1.msra.mxu0 %v611
        %667 = vmatprep.subr.mxu0 %v610
        %668 = vmatpush1.msra.mxu0 %v609
        %669 = vmatprep.subr.mxu0 %v608
        %670 = vmatpush1.msra.mxu0 %v607
        %671 = vmatprep.subr.mxu0 %v606
        %672 = vmatpush1.msra.mxu0 %v605
        %673 = vmatprep.subr.mxu0 %v604
        %674 = vmatpush1.msra.mxu0 %v603
        %675 = vmatprep.subr.mxu0 %v602
        %676 = vmatpush1.msra.mxu0 %v601
        %677 = vmatprep.subr.mxu0 0.0
        %678 = vmatpush2.msra.mxu0 0.0
        %679 = vmatprep.subr.mxu0 0.0
        %680 = vmatpush2.msra.mxu0 0.0
        %681 = vmatprep.subr.mxu0 0.0
        %682 = vmatpush2.msra.mxu0 0.0
        %683 = vmatprep.subr.mxu0 0.0
        %684 = vmatpush2.msra.mxu0 0.0
        %685 = vmatprep.subr.mxu0 0.0
        %686 = vmatpush2.msra.mxu0 0.0
        %687 = vmatprep.subr.mxu0 0.0
        %688 = vmatpush2.msra.mxu0 0.0
        %689 = vmatprep.subr.mxu0 0.0
        %690 = vmatpush2.msra.mxu0 0.0
        %691 = vmatprep.subr.mxu0 0.0
        %692 = vmatpush2.msra.mxu0 0.0
        %693 = vmatprep.subr.mxu0 0.0
        %694 = vmatpush2.msra.mxu0 0.0
        %695 = vmatprep.subr.mxu0 0.0
        %696 = vmatpush2.msra.mxu0 0.0
        %697 = vmatprep.subr.mxu0 0.0
        %698 = vmatpush2.msra.mxu0 0.0
        %699 = vmatprep.subr.mxu0 0.0
        %700 = vmatpush2.msra.mxu0 0.0
        %701 = vmatprep.subr.mxu0 0.0
        %702 = vmatpush2.msra.mxu0 0.0
        %703 = vmatprep.subr.mxu0 0.0
        %704 = vmatpush2.msra.mxu0 0.0
        %705 = vmatprep.subr.mxu0 0.0
        %706 = vmatpush2.msra.mxu0 0.0
        %707 = vmatprep.subr.mxu0 0.0
        %708 = vmatpush2.msra.mxu0 0.0
        %709 = vmatprep.mubr.f32.mxu0 0.0
        %710 = vmatmul.mubr.f32.gmra.mxu0 %v585
        %v711 = vpop.f32.mrf.mxu0
        %v712 = vadd.f32 %v638, %v711
        %v713 = vpop.f32.mrf.mxu0
        %v714 = vadd.f32 %v642, %v713
        %715 = vmatprep.mubr.f32.mxu0 0.0
        %716 = vmatmul.mubr.f32.gmra.mxu0 %v586
        %v717 = vpop.f32.mrf.mxu0
        %v718 = vadd.f32 %v638, %v717
        %v719 = vpop.f32.mrf.mxu0
        %v720 = vadd.f32 %v642, %v719
        %721 = vmatprep.mubr.f32.mxu0 0.0
        %722 = vmatmul.mubr.f32.gmra.mxu0 %v587
        %v723 = vpop.f32.mrf.mxu0
        %v724 = vadd.f32 %v638, %v723
        %v725 = vpop.f32.mrf.mxu0
        %v726 = vadd.f32 %v642, %v725
        %727 = vmatprep.mubr.f32.mxu0 0.0
        %728 = vmatmul.mubr.f32.gmra.mxu0 %v588
        %v729 = vpop.f32.mrf.mxu0
        %v730 = vadd.f32 %v638, %v729
        %v731 = vpop.f32.mrf.mxu0
        %v732 = vadd.f32 %v642, %v731
        %733 = vmatprep.mubr.f32.mxu0 0.0
        %734 = vmatmul.mubr.f32.gmra.mxu0 %v589
        %v735 = vpop.f32.mrf.mxu0
        %v736 = vadd.f32 %v638, %v735
        %v737 = vpop.f32.mrf.mxu0
        %v738 = vadd.f32 %v642, %v737
        %739 = vmatprep.mubr.f32.mxu0 0.0
        %740 = vmatmul.mubr.f32.gmra.mxu0 %v590
        %v741 = vpop.f32.mrf.mxu0
        %v742 = vadd.f32 %v638, %v741
        %v743 = vpop.f32.mrf.mxu0
        %v744 = vadd.f32 %v642, %v743
        %745 = vmatprep.mubr.f32.mxu0 0.0
        %746 = vmatmul.mubr.f32.gmra.mxu0 %v591
        %v747 = vpop.f32.mrf.mxu0
        %v748 = vadd.f32 %v638, %v747
        %v749 = vpop.f32.mrf.mxu0
        %v750 = vadd.f32 %v642, %v749
        %751 = vmatprep.mubr.f32.mxu0 0.0
        %752 = vmatmul.mubr.f32.gmra.mxu0 %v592
        %v753 = vpop.f32.mrf.mxu0
        %v754 = vadd.f32 %v638, %v753
        %v755 = vpop.f32.mrf.mxu0
        %v756 = vadd.f32 %v642, %v755
        %757 = vmatprep.mubr.f32.mxu0 0.0
        %758 = vmatmul.mubr.f32.gmra.mxu0 %v593
        %v759 = vpop.f32.mrf.mxu0
        %v760 = vadd.f32 %v638, %v759
        %v761 = vpop.f32.mrf.mxu0
        %v762 = vadd.f32 %v642, %v761
        %763 = vmatprep.mubr.f32.mxu0 0.0
        %764 = vmatmul.mubr.f32.gmra.mxu0 %v594
        %v765 = vpop.f32.mrf.mxu0
        %v766 = vadd.f32 %v638, %v765
        %v767 = vpop.f32.mrf.mxu0
        %v768 = vadd.f32 %v642, %v767
        %769 = vmatprep.mubr.f32.mxu0 0.0
        %770 = vmatmul.mubr.f32.gmra.mxu0 %v595
        %v771 = vpop.f32.mrf.mxu0
        %v772 = vadd.f32 %v638, %v771
        %v773 = vpop.f32.mrf.mxu0
        %v774 = vadd.f32 %v642, %v773
        %775 = vmatprep.mubr.f32.mxu0 0.0
        %776 = vmatmul.mubr.f32.gmra.mxu0 %v596
        %v777 = vpop.f32.mrf.mxu0
        %v778 = vadd.f32 %v638, %v777
        %v779 = vpop.f32.mrf.mxu0
        %v780 = vadd.f32 %v642, %v779
        %781 = vmatprep.mubr.f32.mxu0 0.0
        %782 = vmatmul.mubr.f32.gmra.mxu0 %v597
        %v783 = vpop.f32.mrf.mxu0
        %v784 = vadd.f32 %v638, %v783
        %v785 = vpop.f32.mrf.mxu0
        %v786 = vadd.f32 %v642, %v785
        %787 = vmatprep.mubr.f32.mxu0 0.0
        %788 = vmatmul.mubr.f32.gmra.mxu0 %v598
        %v789 = vpop.f32.mrf.mxu0
        %v790 = vadd.f32 %v638, %v789
        %v791 = vpop.f32.mrf.mxu0
        %v792 = vadd.f32 %v642, %v791
        %793 = vmatprep.mubr.f32.mxu0 0.0
        %794 = vmatmul.mubr.f32.gmra.mxu0 %v599
        %v795 = vpop.f32.mrf.mxu0
        %v796 = vadd.f32 %v638, %v795
        %v797 = vpop.f32.mrf.mxu0
        %v798 = vadd.f32 %v642, %v797
        %799 = vmatprep.mubr.f32.mxu0 0.0
        %800 = vmatmul.mubr.f32.gmra.mxu0 %v600
        %v801 = vpop.f32.mrf.mxu0
        %v802 = vadd.f32 %v638, %v801
        %v803 = vpop.f32.mrf.mxu0
        %v804 = vadd.f32 %v642, %v803
        %805 = vdwg.mxu0
        %v806 = vmax.f32 %v712, 0.0
        %v807 = vmax.f32 %v714, 0.0
        %v808 = vmax.f32 %v718, 0.0
        %v809 = vmax.f32 %v720, 0.0
        %v810 = vmax.f32 %v724, 0.0
        %v811 = vmax.f32 %v726, 0.0
        %v812 = vmax.f32 %v730, 0.0
        %v813 = vmax.f32 %v732, 0.0
        %v814 = vmax.f32 %v736, 0.0
        %v815 = vmax.f32 %v738, 0.0
        %v816 = vmax.f32 %v742, 0.0
        %v817 = vmax.f32 %v744, 0.0
        %v818 = vmax.f32 %v748, 0.0
        %v819 = vmax.f32 %v750, 0.0
        %v820 = vmax.f32 %v754, 0.0
        %v821 = vmax.f32 %v756, 0.0
        %v822 = vmax.f32 %v760, 0.0
        %v823 = vmax.f32 %v762, 0.0
        %v824 = vmax.f32 %v766, 0.0
        %v825 = vmax.f32 %v768, 0.0
        %v826 = vmax.f32 %v772, 0.0
        %v827 = vmax.f32 %v774, 0.0
        %v828 = vmax.f32 %v778, 0.0
        %v829 = vmax.f32 %v780, 0.0
        %v830 = vmax.f32 %v784, 0.0
        %v831 = vmax.f32 %v786, 0.0
        %v832 = vmax.f32 %v790, 0.0
        %v833 = vmax.f32 %v792, 0.0
        %v834 = vmax.f32 %v796, 0.0
        %v835 = vmax.f32 %v798, 0.0
        %v836 = vmax.f32 %v802, 0.0
        %v837 = vmax.f32 %v804, 0.0
        %v838 = vld [vmem:[#allocation2] sm:$0xff]
        %v839 = vld [vmem:[#allocation2 + $0x8] sm:$0xff]
        %v840 = vld [vmem:[#allocation2 + $0x10] sm:$0xff]
        %v841 = vld [vmem:[#allocation2 + $0x18] sm:$0xff]
        %v842 = vld [vmem:[#allocation2 + $0x20] sm:$0xff]
        %v843 = vld [vmem:[#allocation2 + $0x28] sm:$0xff]
        %v844 = vld [vmem:[#allocation2 + $0x30] sm:$0xff]
        %v845 = vld [vmem:[#allocation2 + $0x38] sm:$0xff]
        %v846 = vld [vmem:[#allocation2 + $0x40] sm:$0xff]
        %v847 = vld [vmem:[#allocation2 + $0x48] sm:$0xff]
        %v848 = vld [vmem:[#allocation2 + $0x50] sm:$0xff]
        %v849 = vld [vmem:[#allocation2 + $0x58] sm:$0xff]
        %v850 = vld [vmem:[#allocation2 + $0x60] sm:$0xff]
        %v851 = vld [vmem:[#allocation2 + $0x68] sm:$0xff]
        %v852 = vld [vmem:[#allocation2 + $0x70] sm:$0xff]
        %v853 = vld [vmem:[#allocation2 + $0x78] sm:$0xff]
        %v854 = vld [vmem:[#allocation2 + $0x80] sm:$0xff]
        %v855 = vld [vmem:[#allocation2 + $0x88] sm:$0xff]
        %v856 = vld [vmem:[#allocation2 + $0x90] sm:$0xff]
        %v857 = vld [vmem:[#allocation2 + $0x98] sm:$0xff]
        %v858 = vld [vmem:[#allocation2 + $0xa0] sm:$0xff]
        %v859 = vld [vmem:[#allocation2 + $0xa8] sm:$0xff]
        %v860 = vld [vmem:[#allocation2 + $0xb0] sm:$0xff]
        %v861 = vld [vmem:[#allocation2 + $0xb8] sm:$0xff]
        %v862 = vld [vmem:[#allocation2 + $0xc0] sm:$0xff]
        %v863 = vld [vmem:[#allocation2 + $0xc8] sm:$0xff]
        %v864 = vld [vmem:[#allocation2 + $0xd0] sm:$0xff]
        %v865 = vld [vmem:[#allocation2 + $0xd8] sm:$0xff]
        %v866 = vld [vmem:[#allocation2 + $0xe0] sm:$0xff]
        %v867 = vld [vmem:[#allocation2 + $0xe8] sm:$0xff]
        %v868 = vld [vmem:[#allocation2 + $0xf0] sm:$0xff]
        %v869 = vld [vmem:[#allocation2 + $0xf8] sm:$0xff]
        %v870 = vld [vmem:[#allocation2 + $0x100] sm:$0xff]
        %v871 = vld [vmem:[#allocation2 + $0x108] sm:$0xff]
        %v872 = vld [vmem:[#allocation2 + $0x110] sm:$0xff]
        %v873 = vld [vmem:[#allocation2 + $0x118] sm:$0xff]
        %v874 = vld [vmem:[#allocation2 + $0x120] sm:$0xff]
        %v875 = vld [vmem:[#allocation2 + $0x128] sm:$0xff]
        %v876 = vld [vmem:[#allocation2 + $0x130] sm:$0xff]
        %v877 = vld [vmem:[#allocation2 + $0x138] sm:$0xff]
        %v878 = vld [vmem:[#allocation2 + $0x140] sm:$0xff]
        %v879 = vld [vmem:[#allocation2 + $0x148] sm:$0xff]
        %v880 = vld [vmem:[#allocation2 + $0x150] sm:$0xff]
        %v881 = vld [vmem:[#allocation2 + $0x158] sm:$0xff]
        %v882 = vld [vmem:[#allocation2 + $0x160] sm:$0xff]
        %v883 = vld [vmem:[#allocation2 + $0x168] sm:$0xff]
        %v884 = vld [vmem:[#allocation2 + $0x170] sm:$0xff]
        %v885 = vld [vmem:[#allocation2 + $0x178] sm:$0xff]
        %v886 = vld [vmem:[#allocation2 + $0x180] sm:$0xff]
        %v887 = vld [vmem:[#allocation2 + $0x188] sm:$0xff]
        %v888 = vld [vmem:[#allocation2 + $0x190] sm:$0xff]
        %v889 = vld [vmem:[#allocation2 + $0x198] sm:$0xff]
        %v890 = vld [vmem:[#allocation2 + $0x1a0] sm:$0xff]
        %v891 = vld [vmem:[#allocation2 + $0x1a8] sm:$0xff]
        %v892 = vld [vmem:[#allocation2 + $0x1b0] sm:$0xff]
        %v893 = vld [vmem:[#allocation2 + $0x1b8] sm:$0xff]
        %v894 = vld [vmem:[#allocation2 + $0x1c0] sm:$0xff]
        %v895 = vld [vmem:[#allocation2 + $0x1c8] sm:$0xff]
        %v896 = vld [vmem:[#allocation2 + $0x1d0] sm:$0xff]
        %v897 = vld [vmem:[#allocation2 + $0x1d8] sm:$0xff]
        %v898 = vld [vmem:[#allocation2 + $0x1e0] sm:$0xff]
        %v899 = vld [vmem:[#allocation2 + $0x1e8] sm:$0xff]
        %v900 = vld [vmem:[#allocation2 + $0x1f0] sm:$0xff]
        %v901 = vld [vmem:[#allocation2 + $0x1f8] sm:$0xff]
        %v902 = vld [vmem:[#allocation2 + $0x200] sm:$0xff]
        %v903 = vld [vmem:[#allocation2 + $0x208] sm:$0xff]
        %v904 = vld [vmem:[#allocation2 + $0x210] sm:$0xff]
        %v905 = vld [vmem:[#allocation2 + $0x218] sm:$0xff]
        %v906 = vld [vmem:[#allocation2 + $0x220] sm:$0xff]
        %v907 = vld [vmem:[#allocation2 + $0x228] sm:$0xff]
        %v908 = vld [vmem:[#allocation2 + $0x230] sm:$0xff]
        %v909 = vld [vmem:[#allocation2 + $0x238] sm:$0xff]
        %v910 = vld [vmem:[#allocation2 + $0x240] sm:$0xff]
        %v911 = vld [vmem:[#allocation2 + $0x248] sm:$0xff]
        %v912 = vld [vmem:[#allocation2 + $0x250] sm:$0xff]
        %v913 = vld [vmem:[#allocation2 + $0x258] sm:$0xff]
        %v914 = vld [vmem:[#allocation2 + $0x260] sm:$0xff]
        %v915 = vld [vmem:[#allocation2 + $0x268] sm:$0xff]
        %v916 = vld [vmem:[#allocation2 + $0x270] sm:$0xff]
        %v917 = vld [vmem:[#allocation2 + $0x278] sm:$0xff]
        %v918 = vld [vmem:[#allocation2 + $0x280] sm:$0xff]
        %v919 = vld [vmem:[#allocation2 + $0x288] sm:$0xff]
        %v920 = vld [vmem:[#allocation2 + $0x290] sm:$0xff]
        %v921 = vld [vmem:[#allocation2 + $0x298] sm:$0xff]
        %v922 = vld [vmem:[#allocation2 + $0x2a0] sm:$0xff]
        %v923 = vld [vmem:[#allocation2 + $0x2a8] sm:$0xff]
        %v924 = vld [vmem:[#allocation2 + $0x2b0] sm:$0xff]
        %v925 = vld [vmem:[#allocation2 + $0x2b8] sm:$0xff]
        %v926 = vld [vmem:[#allocation2 + $0x2c0] sm:$0xff]
        %v927 = vld [vmem:[#allocation2 + $0x2c8] sm:$0xff]
        %v928 = vld [vmem:[#allocation2 + $0x2d0] sm:$0xff]
        %v929 = vld [vmem:[#allocation2 + $0x2d8] sm:$0xff]
        %v930 = vld [vmem:[#allocation2 + $0x2e0] sm:$0xff]
        %v931 = vld [vmem:[#allocation2 + $0x2e8] sm:$0xff]
        %v932 = vld [vmem:[#allocation2 + $0x2f0] sm:$0xff]
        %v933 = vld [vmem:[#allocation2 + $0x2f8] sm:$0xff]
        %v934 = vld [vmem:[#allocation2 + $0x300] sm:$0xff]
        %v935 = vld [vmem:[#allocation2 + $0x308] sm:$0xff]
        %v936 = vld [vmem:[#allocation2 + $0x310] sm:$0xff]
        %v937 = vld [vmem:[#allocation2 + $0x318] sm:$0xff]
        %v938 = vld [vmem:[#allocation2 + $0x320] sm:$0xff]
        %v939 = vld [vmem:[#allocation2 + $0x328] sm:$0xff]
        %v940 = vld [vmem:[#allocation2 + $0x330] sm:$0xff]
        %v941 = vld [vmem:[#allocation2 + $0x338] sm:$0xff]
        %v942 = vld [vmem:[#allocation2 + $0x340] sm:$0xff]
        %v943 = vld [vmem:[#allocation2 + $0x348] sm:$0xff]
        %v944 = vld [vmem:[#allocation2 + $0x350] sm:$0xff]
        %v945 = vld [vmem:[#allocation2 + $0x358] sm:$0xff]
        %v946 = vld [vmem:[#allocation2 + $0x360] sm:$0xff]
        %v947 = vld [vmem:[#allocation2 + $0x368] sm:$0xff]
        %v948 = vld [vmem:[#allocation2 + $0x370] sm:$0xff]
        %v949 = vld [vmem:[#allocation2 + $0x378] sm:$0xff]
        %v950 = vld [vmem:[#allocation2 + $0x380] sm:$0xff]
        %v951 = vld [vmem:[#allocation2 + $0x388] sm:$0xff]
        %v952 = vld [vmem:[#allocation2 + $0x390] sm:$0xff]
        %v953 = vld [vmem:[#allocation2 + $0x398] sm:$0xff]
        %v954 = vld [vmem:[#allocation2 + $0x3a0] sm:$0xff]
        %v955 = vld [vmem:[#allocation2 + $0x3a8] sm:$0xff]
        %v956 = vld [vmem:[#allocation2 + $0x3b0] sm:$0xff]
        %v957 = vld [vmem:[#allocation2 + $0x3b8] sm:$0xff]
        %v958 = vld [vmem:[#allocation2 + $0x3c0] sm:$0xff]
        %v959 = vld [vmem:[#allocation2 + $0x3c8] sm:$0xff]
        %v960 = vld [vmem:[#allocation2 + $0x3d0] sm:$0xff]
        %v961 = vld [vmem:[#allocation2 + $0x3d8] sm:$0xff]
        %v962 = vld [vmem:[#allocation2 + $0x3e0] sm:$0xff]
        %v963 = vld [vmem:[#allocation2 + $0x3e8] sm:$0xff]
        %v964 = vld [vmem:[#allocation2 + $0x3f0] sm:$0xff]
        %v965 = vld [vmem:[#allocation2 + $0x3f8] sm:$0xff]
        %v966 = vld [vmem:[%s6] sm:$0xf]
        %v968 = vlaneseq
        %v969 = vshrl.u32 %v968, 7
        %v970 = vsub.s32 0, %v969
        %v971 = vrot.slane %v966, %v970
        %v972 = vlaneseq
        %v973 = vshrl.u32 %v972, 7
        %v974 = vsub.s32 1, %v973
        %v975 = vrot.slane %v966, %v974
        %v976 = vlaneseq
        %v977 = vshrl.u32 %v976, 7
        %v978 = vsub.s32 2, %v977
        %v979 = vrot.slane %v966, %v978
        %v980 = vlaneseq
        %v981 = vshrl.u32 %v980, 7
        %v982 = vsub.s32 3, %v981
        %v983 = vrot.slane %v966, %v982
        %988 = vmatprep.subr.mxu0 %v899
        %989 = vmatpush1.msra.mxu0 %v898
        %990 = vmatprep.subr.mxu0 %v895
        %991 = vmatpush1.msra.mxu0 %v894
        %992 = vmatprep.subr.mxu0 %v891
        %993 = vmatpush1.msra.mxu0 %v890
        %994 = vmatprep.subr.mxu0 %v887
        %995 = vmatpush1.msra.mxu0 %v886
        %996 = vmatprep.subr.mxu0 %v883
        %997 = vmatpush1.msra.mxu0 %v882
        %998 = vmatprep.subr.mxu0 %v879
        %999 = vmatpush1.msra.mxu0 %v878
        %1000 = vmatprep.subr.mxu0 %v875
        %1001 = vmatpush1.msra.mxu0 %v874
        %1002 = vmatprep.subr.mxu0 %v871
        %1003 = vmatpush1.msra.mxu0 %v870
        %1004 = vmatprep.subr.mxu0 %v867
        %1005 = vmatpush1.msra.mxu0 %v866
        %1006 = vmatprep.subr.mxu0 %v863
        %1007 = vmatpush1.msra.mxu0 %v862
        %1008 = vmatprep.subr.mxu0 %v859
        %1009 = vmatpush1.msra.mxu0 %v858
        %1010 = vmatprep.subr.mxu0 %v855
        %1011 = vmatpush1.msra.mxu0 %v854
        %1012 = vmatprep.subr.mxu0 %v851
        %1013 = vmatpush1.msra.mxu0 %v850
        %1014 = vmatprep.subr.mxu0 %v847
        %1015 = vmatpush1.msra.mxu0 %v846
        %1016 = vmatprep.subr.mxu0 %v843
        %1017 = vmatpush1.msra.mxu0 %v842
        %1018 = vmatprep.subr.mxu0 %v839
        %1019 = vmatpush1.msra.mxu0 %v838
        %1020 = vmatprep.subr.mxu0 %v963
        %1021 = vmatpush2.msra.mxu0 %v962
        %1022 = vmatprep.subr.mxu0 %v959
        %1023 = vmatpush2.msra.mxu0 %v958
        %1024 = vmatprep.subr.mxu0 %v955
        %1025 = vmatpush2.msra.mxu0 %v954
        %1026 = vmatprep.subr.mxu0 %v951
        %1027 = vmatpush2.msra.mxu0 %v950
        %1028 = vmatprep.subr.mxu0 %v947
        %1029 = vmatpush2.msra.mxu0 %v946
        %1030 = vmatprep.subr.mxu0 %v943
        %1031 = vmatpush2.msra.mxu0 %v942
        %1032 = vmatprep.subr.mxu0 %v939
        %1033 = vmatpush2.msra.mxu0 %v938
        %1034 = vmatprep.subr.mxu0 %v935
        %1035 = vmatpush2.msra.mxu0 %v934
        %1036 = vmatprep.subr.mxu0 %v931
        %1037 = vmatpush2.msra.mxu0 %v930
        %1038 = vmatprep.subr.mxu0 %v927
        %1039 = vmatpush2.msra.mxu0 %v926
        %1040 = vmatprep.subr.mxu0 %v923
        %1041 = vmatpush2.msra.mxu0 %v922
        %1042 = vmatprep.subr.mxu0 %v919
        %1043 = vmatpush2.msra.mxu0 %v918
        %1044 = vmatprep.subr.mxu0 %v915
        %1045 = vmatpush2.msra.mxu0 %v914
        %1046 = vmatprep.subr.mxu0 %v911
        %1047 = vmatpush2.msra.mxu0 %v910
        %1048 = vmatprep.subr.mxu0 %v907
        %1049 = vmatpush2.msra.mxu0 %v906
        %1050 = vmatprep.subr.mxu0 %v903
        %1051 = vmatpush2.msra.mxu0 %v902
        %1052 = vmatprep.mubr.f32.mxu0 %v807
        %1053 = vmatmul.mubr.f32.gmra.mxu0 %v806
        %v1054 = vpop.f32.mrf.mxu0
        %v1055 = vadd.f32 %v971, %v1054
        %v1056 = vpop.f32.mrf.mxu0
        %v1057 = vadd.f32 %v975, %v1056
        %1058 = vmatprep.mubr.f32.mxu0 %v809
        %1059 = vmatmul.mubr.f32.gmra.mxu0 %v808
        %v1060 = vpop.f32.mrf.mxu0
        %v1061 = vadd.f32 %v971, %v1060
        %v1062 = vpop.f32.mrf.mxu0
        %v1063 = vadd.f32 %v975, %v1062
        %1064 = vmatprep.mubr.f32.mxu0 %v811
        %1065 = vmatmul.mubr.f32.gmra.mxu0 %v810
        %v1066 = vpop.f32.mrf.mxu0
        %v1067 = vadd.f32 %v971, %v1066
        %v1068 = vpop.f32.mrf.mxu0
        %v1069 = vadd.f32 %v975, %v1068
        %1070 = vmatprep.mubr.f32.mxu0 %v813
        %1071 = vmatmul.mubr.f32.gmra.mxu0 %v812
        %v1072 = vpop.f32.mrf.mxu0
        %v1073 = vadd.f32 %v971, %v1072
        %v1074 = vpop.f32.mrf.mxu0
        %v1075 = vadd.f32 %v975, %v1074
        %1076 = vmatprep.mubr.f32.mxu0 %v815
        %1077 = vmatmul.mubr.f32.gmra.mxu0 %v814
        %v1078 = vpop.f32.mrf.mxu0
        %v1079 = vadd.f32 %v971, %v1078
        %v1080 = vpop.f32.mrf.mxu0
        %v1081 = vadd.f32 %v975, %v1080
        %1082 = vmatprep.mubr.f32.mxu0 %v817
        %1083 = vmatmul.mubr.f32.gmra.mxu0 %v816
        %v1084 = vpop.f32.mrf.mxu0
        %v1085 = vadd.f32 %v971, %v1084
        %v1086 = vpop.f32.mrf.mxu0
        %v1087 = vadd.f32 %v975, %v1086
        %1088 = vmatprep.mubr.f32.mxu0 %v819
        %1089 = vmatmul.mubr.f32.gmra.mxu0 %v818
        %v1090 = vpop.f32.mrf.mxu0
        %v1091 = vadd.f32 %v971, %v1090
        %v1092 = vpop.f32.mrf.mxu0
        %v1093 = vadd.f32 %v975, %v1092
        %1094 = vmatprep.mubr.f32.mxu0 %v821
        %1095 = vmatmul.mubr.f32.gmra.mxu0 %v820
        %v1096 = vpop.f32.mrf.mxu0
        %v1097 = vadd.f32 %v971, %v1096
        %v1098 = vpop.f32.mrf.mxu0
        %v1099 = vadd.f32 %v975, %v1098
        %1100 = vmatprep.mubr.f32.mxu0 %v823
        %1101 = vmatmul.mubr.f32.gmra.mxu0 %v822
        %v1102 = vpop.f32.mrf.mxu0
        %v1103 = vadd.f32 %v971, %v1102
        %v1104 = vpop.f32.mrf.mxu0
        %v1105 = vadd.f32 %v975, %v1104
        %1106 = vmatprep.mubr.f32.mxu0 %v825
        %1107 = vmatmul.mubr.f32.gmra.mxu0 %v824
        %v1108 = vpop.f32.mrf.mxu0
        %v1109 = vadd.f32 %v971, %v1108
        %v1110 = vpop.f32.mrf.mxu0
        %v1111 = vadd.f32 %v975, %v1110
        %1112 = vmatprep.mubr.f32.mxu0 %v827
        %1113 = vmatmul.mubr.f32.gmra.mxu0 %v826
        %v1114 = vpop.f32.mrf.mxu0
        %v1115 = vadd.f32 %v971, %v1114
        %v1116 = vpop.f32.mrf.mxu0
        %v1117 = vadd.f32 %v975, %v1116
        %1118 = vmatprep.mubr.f32.mxu0 %v829
        %1119 = vmatmul.mubr.f32.gmra.mxu0 %v828
        %v1120 = vpop.f32.mrf.mxu0
        %v1121 = vadd.f32 %v971, %v1120
        %v1122 = vpop.f32.mrf.mxu0
        %v1123 = vadd.f32 %v975, %v1122
        %1124 = vmatprep.mubr.f32.mxu0 %v831
        %1125 = vmatmul.mubr.f32.gmra.mxu0 %v830
        %v1126 = vpop.f32.mrf.mxu0
        %v1127 = vadd.f32 %v971, %v1126
        %v1128 = vpop.f32.mrf.mxu0
        %v1129 = vadd.f32 %v975, %v1128
        %1130 = vmatprep.mubr.f32.mxu0 %v833
        %1131 = vmatmul.mubr.f32.gmra.mxu0 %v832
        %v1132 = vpop.f32.mrf.mxu0
        %v1133 = vadd.f32 %v971, %v1132
        %v1134 = vpop.f32.mrf.mxu0
        %v1135 = vadd.f32 %v975, %v1134
        %1136 = vmatprep.mubr.f32.mxu0 %v835
        %1137 = vmatmul.mubr.f32.gmra.mxu0 %v834
        %v1138 = vpop.f32.mrf.mxu0
        %v1139 = vadd.f32 %v971, %v1138
        %v1140 = vpop.f32.mrf.mxu0
        %v1141 = vadd.f32 %v975, %v1140
        %1142 = vmatprep.mubr.f32.mxu0 %v837
        %1143 = vmatmul.mubr.f32.gmra.mxu0 %v836
        %v1144 = vpop.f32.mrf.mxu0
        %v1145 = vadd.f32 %v971, %v1144
        %v1146 = vpop.f32.mrf.mxu0
        %v1147 = vadd.f32 %v975, %v1146
        %1148 = vdwg.mxu0
        %1149 = vmatprep.subr.mxu0 %v901
        %1150 = vmatpush1.msra.mxu0 %v900
        %1151 = vmatprep.subr.mxu0 %v897
        %1152 = vmatpush1.msra.mxu0 %v896
        %1153 = vmatprep.subr.mxu0 %v893
        %1154 = vmatpush1.msra.mxu0 %v892
        %1155 = vmatprep.subr.mxu0 %v889
        %1156 = vmatpush1.msra.mxu0 %v888
        %1157 = vmatprep.subr.mxu0 %v885
        %1158 = vmatpush1.msra.mxu0 %v884
        %1159 = vmatprep.subr.mxu0 %v881
        %1160 = vmatpush1.msra.mxu0 %v880
        %1161 = vmatprep.subr.mxu0 %v877
        %1162 = vmatpush1.msra.mxu0 %v876
        %1163 = vmatprep.subr.mxu0 %v873
        %1164 = vmatpush1.msra.mxu0 %v872
        %1165 = vmatprep.subr.mxu0 %v869
        %1166 = vmatpush1.msra.mxu0 %v868
        %1167 = vmatprep.subr.mxu0 %v865
        %1168 = vmatpush1.msra.mxu0 %v864
        %1169 = vmatprep.subr.mxu0 %v861
        %1170 = vmatpush1.msra.mxu0 %v860
        %1171 = vmatprep.subr.mxu0 %v857
        %1172 = vmatpush1.msra.mxu0 %v856
        %1173 = vmatprep.subr.mxu0 %v853
        %1174 = vmatpush1.msra.mxu0 %v852
        %1175 = vmatprep.subr.mxu0 %v849
        %1176 = vmatpush1.msra.mxu0 %v848
        %1177 = vmatprep.subr.mxu0 %v845
        %1178 = vmatpush1.msra.mxu0 %v844
        %1179 = vmatprep.subr.mxu0 %v841
        %1180 = vmatpush1.msra.mxu0 %v840
        %1181 = vmatprep.subr.mxu0 %v965
        %1182 = vmatpush2.msra.mxu0 %v964
        %1183 = vmatprep.subr.mxu0 %v961
        %1184 = vmatpush2.msra.mxu0 %v960
        %1185 = vmatprep.subr.mxu0 %v957
        %1186 = vmatpush2.msra.mxu0 %v956
        %1187 = vmatprep.subr.mxu0 %v953
        %1188 = vmatpush2.msra.mxu0 %v952
        %1189 = vmatprep.subr.mxu0 %v949
        %1190 = vmatpush2.msra.mxu0 %v948
        %1191 = vmatprep.subr.mxu0 %v945
        %1192 = vmatpush2.msra.mxu0 %v944
        %1193 = vmatprep.subr.mxu0 %v941
        %1194 = vmatpush2.msra.mxu0 %v940
        %1195 = vmatprep.subr.mxu0 %v937
        %1196 = vmatpush2.msra.mxu0 %v936
        %1197 = vmatprep.subr.mxu0 %v933
        %1198 = vmatpush2.msra.mxu0 %v932
        %1199 = vmatprep.subr.mxu0 %v929
        %1200 = vmatpush2.msra.mxu0 %v928
        %1201 = vmatprep.subr.mxu0 %v925
        %1202 = vmatpush2.msra.mxu0 %v924
        %1203 = vmatprep.subr.mxu0 %v921
        %1204 = vmatpush2.msra.mxu0 %v920
        %1205 = vmatprep.subr.mxu0 %v917
        %1206 = vmatpush2.msra.mxu0 %v916
        %1207 = vmatprep.subr.mxu0 %v913
        %1208 = vmatpush2.msra.mxu0 %v912
        %1209 = vmatprep.subr.mxu0 %v909
        %1210 = vmatpush2.msra.mxu0 %v908
        %1211 = vmatprep.subr.mxu0 %v905
        %1212 = vmatpush2.msra.mxu0 %v904
        %1213 = vmatprep.mubr.f32.mxu0 %v807
        %1214 = vmatmul.mubr.f32.gmra.mxu0 %v806
        %v1215 = vpop.f32.mrf.mxu0
        %v1216 = vadd.f32 %v979, %v1215
        %v1217 = vpop.f32.mrf.mxu0
        %v1218 = vadd.f32 %v983, %v1217
        %1219 = vmatprep.mubr.f32.mxu0 %v809
        %1220 = vmatmul.mubr.f32.gmra.mxu0 %v808
        %v1221 = vpop.f32.mrf.mxu0
        %v1222 = vadd.f32 %v979, %v1221
        %v1223 = vpop.f32.mrf.mxu0
        %v1224 = vadd.f32 %v983, %v1223
        %1225 = vmatprep.mubr.f32.mxu0 %v811
        %1226 = vmatmul.mubr.f32.gmra.mxu0 %v810
        %v1227 = vpop.f32.mrf.mxu0
        %v1228 = vadd.f32 %v979, %v1227
        %v1229 = vpop.f32.mrf.mxu0
        %v1230 = vadd.f32 %v983, %v1229
        %1231 = vmatprep.mubr.f32.mxu0 %v813
        %1232 = vmatmul.mubr.f32.gmra.mxu0 %v812
        %v1233 = vpop.f32.mrf.mxu0
        %v1234 = vadd.f32 %v979, %v1233
        %v1235 = vpop.f32.mrf.mxu0
        %v1236 = vadd.f32 %v983, %v1235
        %1237 = vmatprep.mubr.f32.mxu0 %v815
        %1238 = vmatmul.mubr.f32.gmra.mxu0 %v814
        %v1239 = vpop.f32.mrf.mxu0
        %v1240 = vadd.f32 %v979, %v1239
        %v1241 = vpop.f32.mrf.mxu0
        %v1242 = vadd.f32 %v983, %v1241
        %1243 = vmatprep.mubr.f32.mxu0 %v817
        %1244 = vmatmul.mubr.f32.gmra.mxu0 %v816
        %v1245 = vpop.f32.mrf.mxu0
        %v1246 = vadd.f32 %v979, %v1245
        %v1247 = vpop.f32.mrf.mxu0
        %v1248 = vadd.f32 %v983, %v1247
        %1249 = vmatprep.mubr.f32.mxu0 %v819
        %1250 = vmatmul.mubr.f32.gmra.mxu0 %v818
        %v1251 = vpop.f32.mrf.mxu0
        %v1252 = vadd.f32 %v979, %v1251
        %v1253 = vpop.f32.mrf.mxu0
        %v1254 = vadd.f32 %v983, %v1253
        %1255 = vmatprep.mubr.f32.mxu0 %v821
        %1256 = vmatmul.mubr.f32.gmra.mxu0 %v820
        %v1257 = vpop.f32.mrf.mxu0
        %v1258 = vadd.f32 %v979, %v1257
        %v1259 = vpop.f32.mrf.mxu0
        %v1260 = vadd.f32 %v983, %v1259
        %1261 = vmatprep.mubr.f32.mxu0 %v823
        %1262 = vmatmul.mubr.f32.gmra.mxu0 %v822
        %v1263 = vpop.f32.mrf.mxu0
        %v1264 = vadd.f32 %v979, %v1263
        %v1265 = vpop.f32.mrf.mxu0
        %v1266 = vadd.f32 %v983, %v1265
        %1267 = vmatprep.mubr.f32.mxu0 %v825
        %1268 = vmatmul.mubr.f32.gmra.mxu0 %v824
        %v1269 = vpop.f32.mrf.mxu0
        %v1270 = vadd.f32 %v979, %v1269
        %v1271 = vpop.f32.mrf.mxu0
        %v1272 = vadd.f32 %v983, %v1271
        %1273 = vmatprep.mubr.f32.mxu0 %v827
        %1274 = vmatmul.mubr.f32.gmra.mxu0 %v826
        %v1275 = vpop.f32.mrf.mxu0
        %v1276 = vadd.f32 %v979, %v1275
        %v1277 = vpop.f32.mrf.mxu0
        %v1278 = vadd.f32 %v983, %v1277
        %1279 = vmatprep.mubr.f32.mxu0 %v829
        %1280 = vmatmul.mubr.f32.gmra.mxu0 %v828
        %v1281 = vpop.f32.mrf.mxu0
        %v1282 = vadd.f32 %v979, %v1281
        %v1283 = vpop.f32.mrf.mxu0
        %v1284 = vadd.f32 %v983, %v1283
        %1285 = vmatprep.mubr.f32.mxu0 %v831
        %1286 = vmatmul.mubr.f32.gmra.mxu0 %v830
        %v1287 = vpop.f32.mrf.mxu0
        %v1288 = vadd.f32 %v979, %v1287
        %v1289 = vpop.f32.mrf.mxu0
        %v1290 = vadd.f32 %v983, %v1289
        %1291 = vmatprep.mubr.f32.mxu0 %v833
        %1292 = vmatmul.mubr.f32.gmra.mxu0 %v832
        %v1293 = vpop.f32.mrf.mxu0
        %v1294 = vadd.f32 %v979, %v1293
        %v1295 = vpop.f32.mrf.mxu0
        %v1296 = vadd.f32 %v983, %v1295
        %1297 = vmatprep.mubr.f32.mxu0 %v835
        %1298 = vmatmul.mubr.f32.gmra.mxu0 %v834
        %v1299 = vpop.f32.mrf.mxu0
        %v1300 = vadd.f32 %v979, %v1299
        %v1301 = vpop.f32.mrf.mxu0
        %v1302 = vadd.f32 %v983, %v1301
        %1303 = vmatprep.mubr.f32.mxu0 %v837
        %1304 = vmatmul.mubr.f32.gmra.mxu0 %v836
        %v1305 = vpop.f32.mrf.mxu0
        %v1306 = vadd.f32 %v979, %v1305
        %v1307 = vpop.f32.mrf.mxu0
        %v1308 = vadd.f32 %v983, %v1307
        %1309 = vdwg.mxu0
        %v1310 = vmax.f32 %v1055, 0.0
        %v1311 = vmax.f32 %v1057, 0.0
        %v1312 = vmax.f32 %v1216, 0.0
        %v1313 = vmax.f32 %v1218, 0.0
        %v1314 = vmax.f32 %v1061, 0.0
        %v1315 = vmax.f32 %v1063, 0.0
        %v1316 = vmax.f32 %v1222, 0.0
        %v1317 = vmax.f32 %v1224, 0.0
        %v1318 = vmax.f32 %v1067, 0.0
        %v1319 = vmax.f32 %v1069, 0.0
        %v1320 = vmax.f32 %v1228, 0.0
        %v1321 = vmax.f32 %v1230, 0.0
        %v1322 = vmax.f32 %v1073, 0.0
        %v1323 = vmax.f32 %v1075, 0.0
        %v1324 = vmax.f32 %v1234, 0.0
        %v1325 = vmax.f32 %v1236, 0.0
        %v1326 = vmax.f32 %v1079, 0.0
        %v1327 = vmax.f32 %v1081, 0.0
        %v1328 = vmax.f32 %v1240, 0.0
        %v1329 = vmax.f32 %v1242, 0.0
        %v1330 = vmax.f32 %v1085, 0.0
        %v1331 = vmax.f32 %v1087, 0.0
        %v1332 = vmax.f32 %v1246, 0.0
        %v1333 = vmax.f32 %v1248, 0.0
        %v1334 = vmax.f32 %v1091, 0.0
        %v1335 = vmax.f32 %v1093, 0.0
        %v1336 = vmax.f32 %v1252, 0.0
        %v1337 = vmax.f32 %v1254, 0.0
        %v1338 = vmax.f32 %v1097, 0.0
        %v1339 = vmax.f32 %v1099, 0.0
        %v1340 = vmax.f32 %v1258, 0.0
        %v1341 = vmax.f32 %v1260, 0.0
        %v1342 = vmax.f32 %v1103, 0.0
        %v1343 = vmax.f32 %v1105, 0.0
        %v1344 = vmax.f32 %v1264, 0.0
        %v1345 = vmax.f32 %v1266, 0.0
        %v1346 = vmax.f32 %v1109, 0.0
        %v1347 = vmax.f32 %v1111, 0.0
        %v1348 = vmax.f32 %v1270, 0.0
        %v1349 = vmax.f32 %v1272, 0.0
        %v1350 = vmax.f32 %v1115, 0.0
        %v1351 = vmax.f32 %v1117, 0.0
        %v1352 = vmax.f32 %v1276, 0.0
        %v1353 = vmax.f32 %v1278, 0.0
        %v1354 = vmax.f32 %v1121, 0.0
        %v1355 = vmax.f32 %v1123, 0.0
        %v1356 = vmax.f32 %v1282, 0.0
        %v1357 = vmax.f32 %v1284, 0.0
        %v1358 = vmax.f32 %v1127, 0.0
        %v1359 = vmax.f32 %v1129, 0.0
        %v1360 = vmax.f32 %v1288, 0.0
        %v1361 = vmax.f32 %v1290, 0.0
        %v1362 = vmax.f32 %v1133, 0.0
        %v1363 = vmax.f32 %v1135, 0.0
        %v1364 = vmax.f32 %v1294, 0.0
        %v1365 = vmax.f32 %v1296, 0.0
        %v1366 = vmax.f32 %v1139, 0.0
        %v1367 = vmax.f32 %v1141, 0.0
        %v1368 = vmax.f32 %v1300, 0.0
        %v1369 = vmax.f32 %v1302, 0.0
        %v1370 = vmax.f32 %v1145, 0.0
        %v1371 = vmax.f32 %v1147, 0.0
        %v1372 = vmax.f32 %v1306, 0.0
        %v1373 = vmax.f32 %v1308, 0.0
        %v1374 = vld [vmem:[#allocation5] sm:$0xff]
        %v1375 = vld [vmem:[#allocation5 + $0x8] sm:$0xff]
        %v1376 = vld [vmem:[#allocation5 + $0x10] sm:$0xff]
        %v1377 = vld [vmem:[#allocation5 + $0x18] sm:$0xff]
        %v1378 = vld [vmem:[#allocation5 + $0x20] sm:$0xff]
        %v1379 = vld [vmem:[#allocation5 + $0x28] sm:$0xff]
        %v1380 = vld [vmem:[#allocation5 + $0x30] sm:$0xff]
        %v1381 = vld [vmem:[#allocation5 + $0x38] sm:$0xff]
        %v1382 = vld [vmem:[#allocation5 + $0x40] sm:$0xff]
        %v1383 = vld [vmem:[#allocation5 + $0x48] sm:$0xff]
        %v1384 = vld [vmem:[#allocation5 + $0x50] sm:$0xff]
        %v1385 = vld [vmem:[#allocation5 + $0x58] sm:$0xff]
        %v1386 = vld [vmem:[#allocation5 + $0x60] sm:$0xff]
        %v1387 = vld [vmem:[#allocation5 + $0x68] sm:$0xff]
        %v1388 = vld [vmem:[#allocation5 + $0x70] sm:$0xff]
        %v1389 = vld [vmem:[#allocation5 + $0x78] sm:$0xff]
        %v1390 = vld [vmem:[#allocation5 + $0x80] sm:$0xff]
        %v1391 = vld [vmem:[#allocation5 + $0x88] sm:$0xff]
        %v1392 = vld [vmem:[#allocation5 + $0x90] sm:$0xff]
        %v1393 = vld [vmem:[#allocation5 + $0x98] sm:$0xff]
        %v1394 = vld [vmem:[#allocation5 + $0xa0] sm:$0xff]
        %v1395 = vld [vmem:[#allocation5 + $0xa8] sm:$0xff]
        %v1396 = vld [vmem:[#allocation5 + $0xb0] sm:$0xff]
        %v1397 = vld [vmem:[#allocation5 + $0xb8] sm:$0xff]
        %v1398 = vld [vmem:[#allocation5 + $0xc0] sm:$0xff]
        %v1399 = vld [vmem:[#allocation5 + $0xc8] sm:$0xff]
        %v1400 = vld [vmem:[#allocation5 + $0xd0] sm:$0xff]
        %v1401 = vld [vmem:[#allocation5 + $0xd8] sm:$0xff]
        %v1402 = vld [vmem:[#allocation5 + $0xe0] sm:$0xff]
        %v1403 = vld [vmem:[#allocation5 + $0xe8] sm:$0xff]
        %v1404 = vld [vmem:[#allocation5 + $0xf0] sm:$0xff]
        %v1405 = vld [vmem:[#allocation5 + $0xf8] sm:$0xff]
        %v1406 = vld [vmem:[#allocation5 + $0x100] sm:$0xff]
        %v1407 = vld [vmem:[#allocation5 + $0x108] sm:$0xff]
        %v1408 = vld [vmem:[#allocation5 + $0x110] sm:$0xff]
        %v1409 = vld [vmem:[#allocation5 + $0x118] sm:$0xff]
        %v1410 = vld [vmem:[#allocation5 + $0x120] sm:$0xff]
        %v1411 = vld [vmem:[#allocation5 + $0x128] sm:$0xff]
        %v1412 = vld [vmem:[#allocation5 + $0x130] sm:$0xff]
        %v1413 = vld [vmem:[#allocation5 + $0x138] sm:$0xff]
        %v1414 = vld [vmem:[#allocation5 + $0x140] sm:$0xff]
        %v1415 = vld [vmem:[#allocation5 + $0x148] sm:$0xff]
        %v1416 = vld [vmem:[#allocation5 + $0x150] sm:$0xff]
        %v1417 = vld [vmem:[#allocation5 + $0x158] sm:$0xff]
        %v1418 = vld [vmem:[#allocation5 + $0x160] sm:$0xff]
        %v1419 = vld [vmem:[#allocation5 + $0x168] sm:$0xff]
        %v1420 = vld [vmem:[#allocation5 + $0x170] sm:$0xff]
        %v1421 = vld [vmem:[#allocation5 + $0x178] sm:$0xff]
        %v1422 = vld [vmem:[#allocation5 + $0x180] sm:$0xff]
        %v1423 = vld [vmem:[#allocation5 + $0x188] sm:$0xff]
        %v1424 = vld [vmem:[#allocation5 + $0x190] sm:$0xff]
        %v1425 = vld [vmem:[#allocation5 + $0x198] sm:$0xff]
        %v1426 = vld [vmem:[#allocation5 + $0x1a0] sm:$0xff]
        %v1427 = vld [vmem:[#allocation5 + $0x1a8] sm:$0xff]
        %v1428 = vld [vmem:[#allocation5 + $0x1b0] sm:$0xff]
        %v1429 = vld [vmem:[#allocation5 + $0x1b8] sm:$0xff]
        %v1430 = vld [vmem:[#allocation5 + $0x1c0] sm:$0xff]
        %v1431 = vld [vmem:[#allocation5 + $0x1c8] sm:$0xff]
        %v1432 = vld [vmem:[#allocation5 + $0x1d0] sm:$0xff]
        %v1433 = vld [vmem:[#allocation5 + $0x1d8] sm:$0xff]
        %v1434 = vld [vmem:[#allocation5 + $0x1e0] sm:$0xff]
        %v1435 = vld [vmem:[#allocation5 + $0x1e8] sm:$0xff]
        %v1436 = vld [vmem:[#allocation5 + $0x1f0] sm:$0xff]
        %v1437 = vld [vmem:[#allocation5 + $0x1f8] sm:$0xff]
        %v1438 = vld [vmem:[%s8] sm:$0x1]
        %v1440 = vlaneseq
        %v1441 = vshrl.u32 %v1440, 7
        %v1442 = vsub.s32 0, %v1441
        %v1443 = vrot.slane %v1438, %v1442
        %1445 = vmatprep.subr.mxu0 0.0
        %1446 = vmatpush1.msra.mxu0 %v1389
        %1447 = vmatprep.subr.mxu0 0.0
        %1448 = vmatpush1.msra.mxu0 %v1388
        %1449 = vmatprep.subr.mxu0 0.0
        %1450 = vmatpush1.msra.mxu0 %v1387
        %1451 = vmatprep.subr.mxu0 0.0
        %1452 = vmatpush1.msra.mxu0 %v1386
        %1453 = vmatprep.subr.mxu0 0.0
        %1454 = vmatpush1.msra.mxu0 %v1385
        %1455 = vmatprep.subr.mxu0 0.0
        %1456 = vmatpush1.msra.mxu0 %v1384
        %1457 = vmatprep.subr.mxu0 0.0
        %1458 = vmatpush1.msra.mxu0 %v1383
        %1459 = vmatprep.subr.mxu0 0.0
        %1460 = vmatpush1.msra.mxu0 %v1382
        %1461 = vmatprep.subr.mxu0 0.0
        %1462 = vmatpush1.msra.mxu0 %v1381
        %1463 = vmatprep.subr.mxu0 0.0
        %1464 = vmatpush1.msra.mxu0 %v1380
        %1465 = vmatprep.subr.mxu0 0.0
        %1466 = vmatpush1.msra.mxu0 %v1379
        %1467 = vmatprep.subr.mxu0 0.0
        %1468 = vmatpush1.msra.mxu0 %v1378
        %1469 = vmatprep.subr.mxu0 0.0
        %1470 = vmatpush1.msra.mxu0 %v1377
        %1471 = vmatprep.subr.mxu0 0.0
        %1472 = vmatpush1.msra.mxu0 %v1376
        %1473 = vmatprep.subr.mxu0 0.0
        %1474 = vmatpush1.msra.mxu0 %v1375
        %1475 = vmatprep.subr.mxu0 0.0
        %1476 = vmatpush1.msra.mxu0 %v1374
        %1477 = vmatprep.subr.mxu0 0.0
        %1478 = vmatpush2.msra.mxu0 %v1405
        %1479 = vmatprep.subr.mxu0 0.0
        %1480 = vmatpush2.msra.mxu0 %v1404
        %1481 = vmatprep.subr.mxu0 0.0
        %1482 = vmatpush2.msra.mxu0 %v1403
        %1483 = vmatprep.subr.mxu0 0.0
        %1484 = vmatpush2.msra.mxu0 %v1402
        %1485 = vmatprep.subr.mxu0 0.0
        %1486 = vmatpush2.msra.mxu0 %v1401
        %1487 = vmatprep.subr.mxu0 0.0
        %1488 = vmatpush2.msra.mxu0 %v1400
        %1489 = vmatprep.subr.mxu0 0.0
        %1490 = vmatpush2.msra.mxu0 %v1399
        %1491 = vmatprep.subr.mxu0 0.0
        %1492 = vmatpush2.msra.mxu0 %v1398
        %1493 = vmatprep.subr.mxu0 0.0
        %1494 = vmatpush2.msra.mxu0 %v1397
        %1495 = vmatprep.subr.mxu0 0.0
        %1496 = vmatpush2.msra.mxu0 %v1396
        %1497 = vmatprep.subr.mxu0 0.0
        %1498 = vmatpush2.msra.mxu0 %v1395
        %1499 = vmatprep.subr.mxu0 0.0
        %1500 = vmatpush2.msra.mxu0 %v1394
        %1501 = vmatprep.subr.mxu0 0.0
        %1502 = vmatpush2.msra.mxu0 %v1393
        %1503 = vmatprep.subr.mxu0 0.0
        %1504 = vmatpush2.msra.mxu0 %v1392
        %1505 = vmatprep.subr.mxu0 0.0
        %1506 = vmatpush2.msra.mxu0 %v1391
        %1507 = vmatprep.subr.mxu0 0.0
        %1508 = vmatpush2.msra.mxu0 %v1390
        %1509 = vmatprep.mubr.f32.mxu0 %v1311
        %1510 = vmatmul.mubr.f32.gmra.mxu0 %v1310
        %v1511 = vpop.f32.mrf.mxu0
        %v1512 = vadd.f32 %v1443, %v1511
        %v1513 = vpop.f32.mrf.mxu0
        %1514 = vmatprep.mubr.f32.mxu0 %v1315
        %1515 = vmatmul.mubr.f32.gmra.mxu0 %v1314
        %v1516 = vpop.f32.mrf.mxu0
        %v1517 = vadd.f32 %v1443, %v1516
        %v1518 = vpop.f32.mrf.mxu0
        %1519 = vmatprep.mubr.f32.mxu0 %v1319
        %1520 = vmatmul.mubr.f32.gmra.mxu0 %v1318
        %v1521 = vpop.f32.mrf.mxu0
        %v1522 = vadd.f32 %v1443, %v1521
        %v1523 = vpop.f32.mrf.mxu0
        %1524 = vmatprep.mubr.f32.mxu0 %v1323
        %1525 = vmatmul.mubr.f32.gmra.mxu0 %v1322
        %v1526 = vpop.f32.mrf.mxu0
        %v1527 = vadd.f32 %v1443, %v1526
        %v1528 = vpop.f32.mrf.mxu0
        %1529 = vmatprep.mubr.f32.mxu0 %v1327
        %1530 = vmatmul.mubr.f32.gmra.mxu0 %v1326
        %v1531 = vpop.f32.mrf.mxu0
        %v1532 = vadd.f32 %v1443, %v1531
        %v1533 = vpop.f32.mrf.mxu0
        %1534 = vmatprep.mubr.f32.mxu0 %v1331
        %1535 = vmatmul.mubr.f32.gmra.mxu0 %v1330
        %v1536 = vpop.f32.mrf.mxu0
        %v1537 = vadd.f32 %v1443, %v1536
        %v1538 = vpop.f32.mrf.mxu0
        %1539 = vmatprep.mubr.f32.mxu0 %v1335
        %1540 = vmatmul.mubr.f32.gmra.mxu0 %v1334
        %v1541 = vpop.f32.mrf.mxu0
        %v1542 = vadd.f32 %v1443, %v1541
        %v1543 = vpop.f32.mrf.mxu0
        %1544 = vmatprep.mubr.f32.mxu0 %v1339
        %1545 = vmatmul.mubr.f32.gmra.mxu0 %v1338
        %v1546 = vpop.f32.mrf.mxu0
        %v1547 = vadd.f32 %v1443, %v1546
        %v1548 = vpop.f32.mrf.mxu0
        %1549 = vmatprep.mubr.f32.mxu0 %v1343
        %1550 = vmatmul.mubr.f32.gmra.mxu0 %v1342
        %v1551 = vpop.f32.mrf.mxu0
        %v1552 = vadd.f32 %v1443, %v1551
        %v1553 = vpop.f32.mrf.mxu0
        %1554 = vmatprep.mubr.f32.mxu0 %v1347
        %1555 = vmatmul.mubr.f32.gmra.mxu0 %v1346
        %v1556 = vpop.f32.mrf.mxu0
        %v1557 = vadd.f32 %v1443, %v1556
        %v1558 = vpop.f32.mrf.mxu0
        %1559 = vmatprep.mubr.f32.mxu0 %v1351
        %1560 = vmatmul.mubr.f32.gmra.mxu0 %v1350
        %v1561 = vpop.f32.mrf.mxu0
        %v1562 = vadd.f32 %v1443, %v1561
        %v1563 = vpop.f32.mrf.mxu0
        %1564 = vmatprep.mubr.f32.mxu0 %v1355
        %1565 = vmatmul.mubr.f32.gmra.mxu0 %v1354
        %v1566 = vpop.f32.mrf.mxu0
        %v1567 = vadd.f32 %v1443, %v1566
        %v1568 = vpop.f32.mrf.mxu0
        %1569 = vmatprep.mubr.f32.mxu0 %v1359
        %1570 = vmatmul.mubr.f32.gmra.mxu0 %v1358
        %v1571 = vpop.f32.mrf.mxu0
        %v1572 = vadd.f32 %v1443, %v1571
        %v1573 = vpop.f32.mrf.mxu0
        %1574 = vmatprep.mubr.f32.mxu0 %v1363
        %1575 = vmatmul.mubr.f32.gmra.mxu0 %v1362
        %v1576 = vpop.f32.mrf.mxu0
        %v1577 = vadd.f32 %v1443, %v1576
        %v1578 = vpop.f32.mrf.mxu0
        %1579 = vmatprep.mubr.f32.mxu0 %v1367
        %1580 = vmatmul.mubr.f32.gmra.mxu0 %v1366
        %v1581 = vpop.f32.mrf.mxu0
        %v1582 = vadd.f32 %v1443, %v1581
        %v1583 = vpop.f32.mrf.mxu0
        %1584 = vmatprep.mubr.f32.mxu0 %v1371
        %1585 = vmatmul.mubr.f32.gmra.mxu0 %v1370
        %v1586 = vpop.f32.mrf.mxu0
        %v1587 = vadd.f32 %v1443, %v1586
        %v1588 = vpop.f32.mrf.mxu0
        %1589 = vdwg.mxu0
        %1590 = vmatprep.subr.mxu0 0.0
        %1591 = vmatpush1.msra.mxu0 %v1421
        %1592 = vmatprep.subr.mxu0 0.0
        %1593 = vmatpush1.msra.mxu0 %v1420
        %1594 = vmatprep.subr.mxu0 0.0
        %1595 = vmatpush1.msra.mxu0 %v1419
        %1596 = vmatprep.subr.mxu0 0.0
        %1597 = vmatpush1.msra.mxu0 %v1418
        %1598 = vmatprep.subr.mxu0 0.0
        %1599 = vmatpush1.msra.mxu0 %v1417
        %1600 = vmatprep.subr.mxu0 0.0
        %1601 = vmatpush1.msra.mxu0 %v1416
        %1602 = vmatprep.subr.mxu0 0.0
        %1603 = vmatpush1.msra.mxu0 %v1415
        %1604 = vmatprep.subr.mxu0 0.0
        %1605 = vmatpush1.msra.mxu0 %v1414
        %1606 = vmatprep.subr.mxu0 0.0
        %1607 = vmatpush1.msra.mxu0 %v1413
        %1608 = vmatprep.subr.mxu0 0.0
        %1609 = vmatpush1.msra.mxu0 %v1412
        %1610 = vmatprep.subr.mxu0 0.0
        %1611 = vmatpush1.msra.mxu0 %v1411
        %1612 = vmatprep.subr.mxu0 0.0
        %1613 = vmatpush1.msra.mxu0 %v1410
        %1614 = vmatprep.subr.mxu0 0.0
        %1615 = vmatpush1.msra.mxu0 %v1409
        %1616 = vmatprep.subr.mxu0 0.0
        %1617 = vmatpush1.msra.mxu0 %v1408
        %1618 = vmatprep.subr.mxu0 0.0
        %1619 = vmatpush1.msra.mxu0 %v1407
        %1620 = vmatprep.subr.mxu0 0.0
        %1621 = vmatpush1.msra.mxu0 %v1406
        %1622 = vmatprep.subr.mxu0 0.0
        %1623 = vmatpush2.msra.mxu0 %v1437
        %1624 = vmatprep.subr.mxu0 0.0
        %1625 = vmatpush2.msra.mxu0 %v1436
        %1626 = vmatprep.subr.mxu0 0.0
        %1627 = vmatpush2.msra.mxu0 %v1435
        %1628 = vmatprep.subr.mxu0 0.0
        %1629 = vmatpush2.msra.mxu0 %v1434
        %1630 = vmatprep.subr.mxu0 0.0
        %1631 = vmatpush2.msra.mxu0 %v1433
        %1632 = vmatprep.subr.mxu0 0.0
        %1633 = vmatpush2.msra.mxu0 %v1432
        %1634 = vmatprep.subr.mxu0 0.0
        %1635 = vmatpush2.msra.mxu0 %v1431
        %1636 = vmatprep.subr.mxu0 0.0
        %1637 = vmatpush2.msra.mxu0 %v1430
        %1638 = vmatprep.subr.mxu0 0.0
        %1639 = vmatpush2.msra.mxu0 %v1429
        %1640 = vmatprep.subr.mxu0 0.0
        %1641 = vmatpush2.msra.mxu0 %v1428
        %1642 = vmatprep.subr.mxu0 0.0
        %1643 = vmatpush2.msra.mxu0 %v1427
        %1644 = vmatprep.subr.mxu0 0.0
        %1645 = vmatpush2.msra.mxu0 %v1426
        %1646 = vmatprep.subr.mxu0 0.0
        %1647 = vmatpush2.msra.mxu0 %v1425
        %1648 = vmatprep.subr.mxu0 0.0
        %1649 = vmatpush2.msra.mxu0 %v1424
        %1650 = vmatprep.subr.mxu0 0.0
        %1651 = vmatpush2.msra.mxu0 %v1423
        %1652 = vmatprep.subr.mxu0 0.0
        %1653 = vmatpush2.msra.mxu0 %v1422
        %1654 = vmatprep.mubr.f32.mxu0 %v1313
        %1655 = vmatmul.mubr.f32.gmra.mxu0 %v1312
        %v1656 = vpop.f32.mrf.mxu0
        %v1657 = vadd.f32 %v1512, %v1656
        %v1658 = vpop.f32.mrf.mxu0
        %1659 = vmatprep.mubr.f32.mxu0 %v1317
        %1660 = vmatmul.mubr.f32.gmra.mxu0 %v1316
        %v1661 = vpop.f32.mrf.mxu0
        %v1662 = vadd.f32 %v1517, %v1661
        %v1663 = vpop.f32.mrf.mxu0
        %1664 = vmatprep.mubr.f32.mxu0 %v1321
        %1665 = vmatmul.mubr.f32.gmra.mxu0 %v1320
        %v1666 = vpop.f32.mrf.mxu0
        %v1667 = vadd.f32 %v1522, %v1666
        %v1668 = vpop.f32.mrf.mxu0
        %1669 = vmatprep.mubr.f32.mxu0 %v1325
        %1670 = vmatmul.mubr.f32.gmra.mxu0 %v1324
        %v1671 = vpop.f32.mrf.mxu0
        %v1672 = vadd.f32 %v1527, %v1671
        %v1673 = vpop.f32.mrf.mxu0
        %1674 = vmatprep.mubr.f32.mxu0 %v1329
        %1675 = vmatmul.mubr.f32.gmra.mxu0 %v1328
        %v1676 = vpop.f32.mrf.mxu0
        %v1677 = vadd.f32 %v1532, %v1676
        %v1678 = vpop.f32.mrf.mxu0
        %1679 = vmatprep.mubr.f32.mxu0 %v1333
        %1680 = vmatmul.mubr.f32.gmra.mxu0 %v1332
        %v1681 = vpop.f32.mrf.mxu0
        %v1682 = vadd.f32 %v1537, %v1681
        %v1683 = vpop.f32.mrf.mxu0
        %1684 = vmatprep.mubr.f32.mxu0 %v1337
        %1685 = vmatmul.mubr.f32.gmra.mxu0 %v1336
        %v1686 = vpop.f32.mrf.mxu0
        %v1687 = vadd.f32 %v1542, %v1686
        %v1688 = vpop.f32.mrf.mxu0
        %1689 = vmatprep.mubr.f32.mxu0 %v1341
        %1690 = vmatmul.mubr.f32.gmra.mxu0 %v1340
        %v1691 = vpop.f32.mrf.mxu0
        %v1692 = vadd.f32 %v1547, %v1691
        %v1693 = vpop.f32.mrf.mxu0
        %1694 = vmatprep.mubr.f32.mxu0 %v1345
        %1695 = vmatmul.mubr.f32.gmra.mxu0 %v1344
        %v1696 = vpop.f32.mrf.mxu0
        %v1697 = vadd.f32 %v1552, %v1696
        %v1698 = vpop.f32.mrf.mxu0
        %1699 = vmatprep.mubr.f32.mxu0 %v1349
        %1700 = vmatmul.mubr.f32.gmra.mxu0 %v1348
        %v1701 = vpop.f32.mrf.mxu0
        %v1702 = vadd.f32 %v1557, %v1701
        %v1703 = vpop.f32.mrf.mxu0
        %1704 = vmatprep.mubr.f32.mxu0 %v1353
        %1705 = vmatmul.mubr.f32.gmra.mxu0 %v1352
        %v1706 = vpop.f32.mrf.mxu0
        %v1707 = vadd.f32 %v1562, %v1706
        %v1708 = vpop.f32.mrf.mxu0
        %1709 = vmatprep.mubr.f32.mxu0 %v1357
        %1710 = vmatmul.mubr.f32.gmra.mxu0 %v1356
        %v1711 = vpop.f32.mrf.mxu0
        %v1712 = vadd.f32 %v1567, %v1711
        %v1713 = vpop.f32.mrf.mxu0
        %1714 = vmatprep.mubr.f32.mxu0 %v1361
        %1715 = vmatmul.mubr.f32.gmra.mxu0 %v1360
        %v1716 = vpop.f32.mrf.mxu0
        %v1717 = vadd.f32 %v1572, %v1716
        %v1718 = vpop.f32.mrf.mxu0
        %1719 = vmatprep.mubr.f32.mxu0 %v1365
        %1720 = vmatmul.mubr.f32.gmra.mxu0 %v1364
        %v1721 = vpop.f32.mrf.mxu0
        %v1722 = vadd.f32 %v1577, %v1721
        %v1723 = vpop.f32.mrf.mxu0
        %1724 = vmatprep.mubr.f32.mxu0 %v1369
        %1725 = vmatmul.mubr.f32.gmra.mxu0 %v1368
        %v1726 = vpop.f32.mrf.mxu0
        %v1727 = vadd.f32 %v1582, %v1726
        %v1728 = vpop.f32.mrf.mxu0
        %1729 = vmatprep.mubr.f32.mxu0 %v1373
        %1730 = vmatmul.mubr.f32.gmra.mxu0 %v1372
        %v1731 = vpop.f32.mrf.mxu0
        %v1732 = vadd.f32 %v1587, %v1731
        %v1733 = vpop.f32.mrf.mxu0
        %1734 = vdwg.mxu0
        %v1735 = vlaneseq
        %v1736 = vand.u32 %v1735, 127
        %vm1737 = vcmp.lt.s32.totalorder %v1736, 16
        %v1738 = vsel %vm1737, 0.0, %v1657
        %v1739 = vsel %vm1737, 0.0, %v1662
        %v1740 = vsel %vm1737, 0.0, %v1667
        %v1741 = vsel %vm1737, 0.0, %v1672
        %v1742 = vsel %vm1737, 0.0, %v1677
        %v1743 = vsel %vm1737, 0.0, %v1682
        %v1744 = vsel %vm1737, 0.0, %v1687
        %v1745 = vsel %vm1737, 0.0, %v1692
        %v1746 = vsel %vm1737, 0.0, %v1697
        %v1747 = vsel %vm1737, 0.0, %v1702
        %v1748 = vsel %vm1737, 0.0, %v1707
        %v1749 = vsel %vm1737, 0.0, %v1712
        %v1750 = vsel %vm1737, 0.0, %v1717
        %v1751 = vsel %vm1737, 0.0, %v1722
        %v1752 = vsel %vm1737, 0.0, %v1727
        %v1753 = vsel %vm1737, 0.0, %v1732
        %v1754 = vmul.f32 %v1738, 1.442695
        %v1755 = vpow.pop %v1754
        %v1756 = vmul.f32 %v1739, 1.442695
        %v1757 = vpow.pop %v1756
        %v1758 = vmul.f32 %v1740, 1.442695
        %v1759 = vpow.pop %v1758
        %v1760 = vmul.f32 %v1741, 1.442695
        %v1761 = vpow.pop %v1760
        %v1762 = vmul.f32 %v1742, 1.442695
        %v1763 = vpow.pop %v1762
        %v1764 = vmul.f32 %v1743, 1.442695
        %v1765 = vpow.pop %v1764
        %v1766 = vmul.f32 %v1744, 1.442695
        %v1767 = vpow.pop %v1766
        %v1768 = vmul.f32 %v1745, 1.442695
        %v1769 = vpow.pop %v1768
        %v1770 = vmul.f32 %v1746, 1.442695
        %v1771 = vpow.pop %v1770
        %v1772 = vmul.f32 %v1747, 1.442695
        %v1773 = vpow.pop %v1772
        %v1774 = vmul.f32 %v1748, 1.442695
        %v1775 = vpow.pop %v1774
        %v1776 = vmul.f32 %v1749, 1.442695
        %v1777 = vpow.pop %v1776
        %v1778 = vmul.f32 %v1750, 1.442695
        %v1779 = vpow.pop %v1778
        %v1780 = vmul.f32 %v1751, 1.442695
        %v1781 = vpow.pop %v1780
        %v1782 = vmul.f32 %v1752, 1.442695
        %v1783 = vpow.pop %v1782
        %v1784 = vmul.f32 %v1753, 1.442695
        %v1785 = vpow.pop %v1784
        %v1786 = vsel %vm1737, %v1657, %v1755
        %v1787 = vsel %vm1737, %v1662, %v1757
        %v1788 = vsel %vm1737, %v1667, %v1759
        %v1789 = vsel %vm1737, %v1672, %v1761
        %v1790 = vsel %vm1737, %v1677, %v1763
        %v1791 = vsel %vm1737, %v1682, %v1765
        %v1792 = vsel %vm1737, %v1687, %v1767
        %v1793 = vsel %vm1737, %v1692, %v1769
        %v1794 = vsel %vm1737, %v1697, %v1771
        %v1795 = vsel %vm1737, %v1702, %v1773
        %v1796 = vsel %vm1737, %v1707, %v1775
        %v1797 = vsel %vm1737, %v1712, %v1777
        %v1798 = vsel %vm1737, %v1717, %v1779
        %v1799 = vsel %vm1737, %v1722, %v1781
        %v1800 = vsel %vm1737, %v1727, %v1783
        %v1801 = vsel %vm1737, %v1732, %v1785
        %1802 = vst [vmem:[%s356] sm:$0xff] %v1786
        %1803 = vst [vmem:[%s356 + $0x8] sm:$0xff] %v1787
        %1804 = vst [vmem:[%s356 + $0x10] sm:$0xff] %v1788
        %1805 = vst [vmem:[%s356 + $0x18] sm:$0xff] %v1789
        %1806 = vst [vmem:[%s356 + $0x20] sm:$0xff] %v1790
        %1807 = vst [vmem:[%s356 + $0x28] sm:$0xff] %v1791
        %1808 = vst [vmem:[%s356 + $0x30] sm:$0xff] %v1792
        %1809 = vst [vmem:[%s356 + $0x38] sm:$0xff] %v1793
        %1810 = vst [vmem:[%s356 + $0x40] sm:$0xff] %v1794
        %1811 = vst [vmem:[%s356 + $0x48] sm:$0xff] %v1795
        %1812 = vst [vmem:[%s356 + $0x50] sm:$0xff] %v1796
        %1813 = vst [vmem:[%s356 + $0x58] sm:$0xff] %v1797
        %1814 = vst [vmem:[%s356 + $0x60] sm:$0xff] %v1798
        %1815 = vst [vmem:[%s356 + $0x68] sm:$0xff] %v1799
        %1816 = vst [vmem:[%s356 + $0x70] sm:$0xff] %v1800
        %1817 = vst [vmem:[%s356 + $0x78] sm:$0xff] %v1801
        %s1818 = sand.u32 %s227, 1
        %s1819 = scalar_lea.sflag [#allocation4], %s1818
        %s1820 = sand.u32 %s227, 1
        %s1821 = smul.addr %s1820, 128
        %s1822 = scalar_lea.vmem [#allocation7], %s1821
        // Predicated region
        $region65: #{tpu_custom_call.1} parent=55 // pred_check
          %p1823 = pneg %p237
        $region66: #{tpu_custom_call.1} parent=55 // pred_check_branch
          %1825 = sbr.rel (%p1823) target = $region68
        $region67: #{tpu_custom_call.1} parent=55 // pred_region
          %s1826 = smul.u32 16, %s25
          %s1828 = ssub.s32 2048, 2048
          %1829 = vsyncadd %s1819, %s1828
          %s1830 = smul.addr %s1826, 128
          %s1831 = scalar_lea.hbm %s9, %s1830
          %s1832 = sshll.u32 %s1822, 4
          %s1833 = int_to_ptr.vmem [resolvable:$true] %s1832
          %1838 = dma.vmem_to_hbm [thread:$0]  %s1833, 2048, %s1831, %s1819, 128, 128, 8
        $region68: #{tpu_custom_call.1} parent=55 // pred_fallthru
          _
      $region56: #{tpu_custom_call.1} parent=5 // pred_fallthru
        _
      %p1839 = scmp.le.s32.totalorder 2, %s20
      // Predicated region
      $region69: #{tpu_custom_call.1} parent=5 // pred_check
        %p1840 = pneg %p1839
      $region70: #{tpu_custom_call.1} parent=5 // pred_check_branch
        %1842 = sbr.rel (%p1840) target = $region72
      $region71: #{tpu_custom_call.1} parent=5 // pred_region
        %s1843 = ssub.s32 %s20, 2
        // Predicated region
        $region73: #{tpu_custom_call.1} parent=71 // pred_check
          %p1844 = pneg %p243
        $region74: #{tpu_custom_call.1} parent=71 // pred_check_branch
          %1846 = sbr.rel (%p1844) target = $region76
        $region75: #{tpu_custom_call.1} parent=71 // pred_region
          %s1847 = sand.u32 %s228, 1
          %s1848 = scalar_lea.sflag [#allocation4], %s1847
          %s1849 = sand.u32 %s228, 1
          %s1850 = smul.addr %s1849, 128
          %s1851 = scalar_lea.vmem [#allocation7], %s1850
          %1852 = dma.done %s1848, 2048
        $region76: #{tpu_custom_call.1} parent=71 // pred_fallthru
          _
      $region72: #{tpu_custom_call.1} parent=5 // pred_fallthru
        _
    $region6: #{tpu_custom_call.1} parent=1 // loop_footer
      %s24 = sadd.s32 1, %s20
    $region7: #{tpu_custom_call.1} parent=1 // loop_footer_branch
      %19 = sbr.rel target = $region3
    $region8: #{tpu_custom_call.1} parent=1 // loop_exit
      _
    %1853 = vsyncpa [#allocation3], 1
    %s1854 = scalar_lea.sflag [#allocation3], 1
    %1855 = vsyncpa %s1854, 1
    %1856 = vsyncpa [#allocation6], 1
    %1857 = vsyncpa [#allocation4], 1
    %s1858 = scalar_lea.sflag [#allocation4], 1
    %1859 = vsyncpa %s1858, 1

</llo_original>
